<compile_context>
chip_gen: v7x
topology: tpu7x:2x2x1
jax: 0.10.0
libtpu: 0.0.40
codegen_flags: <defaults>
</compile_context>

<pallas_src>
import jax
import jax.numpy as jnp
from jax import lax
from jax.experimental import pallas as pl
from jax.experimental.pallas import tpu as pltpu


def _dwconv_kernel(x_ref, w_ref, b_ref, o_ref, acc_ref):
    # x_ref:   (H, W, CB)  un-padded input tile (one batch elem, one channel block)
    # w_ref:   (9, CB)     depthwise taps, row = 3*dh + dw
    # b_ref:   (1, CB)     per-channel bias
    # o_ref:   (H, W, CB)  output tile
    # acc_ref: (H, W, CB)  f32 VMEM accumulator
    H, W, C = o_ref.shape

    # Load all 9 per-channel weight rows once (hoisted out of the tap loop).
    w_all = w_ref[...].astype(jnp.float32)                       # (9, CB)
    b_vec = b_ref[...].astype(jnp.float32).reshape(1, 1, C)      # (1, 1, CB)

    # Center tap covers every output pixel -> use it to initialize the accumulator
    # (no separate zero-fill pass).
    w_c = w_all[4:5, :].reshape(1, 1, C)
    acc_ref[...] = x_ref[...].astype(jnp.float32) * w_c

    # Remaining 8 taps: static ref slices along H (major dim) and W (sublanes).
    # Border pixels simply never receive out-of-range taps == zero padding.
    for dh in range(3):
        oh = dh - 1
        for dw in range(3):
            ow = dw - 1
            if oh == 0 and ow == 0:
                continue
            dr0, dr1 = max(0, -oh), H - max(0, oh)   # valid output rows
            dc0, dc1 = max(0, -ow), W - max(0, ow)   # valid output cols
            sr0, sr1 = dr0 + oh, dr1 + oh            # corresponding input rows
            sc0, sc1 = dc0 + ow, dc1 + ow            # corresponding input cols
            tap = x_ref[sr0:sr1, sc0:sc1, :].astype(jnp.float32)
            wgt = w_all[3 * dh + dw: 3 * dh + dw + 1, :].reshape(1, 1, C)
            acc_ref[dr0:dr1, dc0:dc1, :] += tap * wgt

    # Bias fused into the single (lane-dense) output store.
    o_ref[...] = (acc_ref[...] + b_vec).astype(o_ref.dtype)


def dwconv_pallas(x, weight, bias, H, W):
    """Depthwise 3x3 conv, stride 1, pad 1, groups=C, with bias.

    x: (B, N, C) with N == H*W (token layout); weight: (C, 1, 3, 3) (PyTorch
    depthwise layout); bias: (C,).  Returns (B, N, C).
    """
    B, N, C = x.shape
    assert N == H * W, "input feature has wrong size"

    # Lane-dense channel blocking (128 lanes) when possible; otherwise fall back to
    # the full channel dim (still correct, just not lane-dense).
    CB = 128 if (C % 128 == 0) else C
    n_cblk = C // CB

    # (B, N, C) -> (B, H, W, C): pure metadata reshape (row-major), no HBM pass.
    x_nhwc = x.reshape(B, H, W, C)

    # PyTorch depthwise weight (C, 1, 3, 3) -> (9, C) with row index 3*dh + dw.
    w_9c = jnp.transpose(weight[:, 0, :, :], (1, 2, 0)).reshape(9, C)
    b_2d = bias.reshape(1, C)

    itemsize = jnp.dtype(x.dtype).itemsize
    flops = 2 * 9 * B * H * W * C                      # mul + add per tap
    bytes_accessed = (B * H * W * C * itemsize) * 2 + 9 * C * 4 + C * 4

    out = pl.pallas_call(
        _dwconv_kernel,
        out_shape=jax.ShapeDtypeStruct((B, H, W, C), x.dtype),
        grid_spec=pltpu.PrefetchScalarGridSpec(
            num_scalar_prefetch=0,
            grid=(B, n_cblk),
            in_specs=[
                # Leading None = squeezed size-1 batch block -> 3-D kernel refs.
                pl.BlockSpec((None, H, W, CB), lambda b, c: (b, 0, 0, c)),
                pl.BlockSpec((9, CB), lambda b, c: (0, c)),
                pl.BlockSpec((1, CB), lambda b, c: (0, c)),
            ],
            out_specs=pl.BlockSpec((None, H, W, CB), lambda b, c: (b, 0, 0, c)),
            scratch_shapes=[pltpu.VMEM((H, W, CB), jnp.float32)],
        ),
        compiler_params=pltpu.CompilerParams(
            dimension_semantics=("parallel", "parallel"),
            vmem_limit_bytes=64 * 1024 * 1024,
        ),
        cost_estimate=pl.CostEstimate(
            flops=flops, transcendentals=0, bytes_accessed=bytes_accessed),
    )(x_nhwc, w_9c, b_2d)

    # (B, H, W, C) -> (B, N, C): metadata reshape.
    return out.reshape(B, N, C)


def _reference_dwconv(x, weight, bias, H, W):
    """Pure-JAX reference using lax.conv_general_dilated (depthwise)."""
    B, N, C = x.shape
    x_nchw = jnp.transpose(x, (0, 2, 1)).reshape(B, C, H, W)
    out = lax.conv_general_dilated(
        x_nchw, weight,
        window_strides=(1, 1), padding=((1, 1), (1, 1)),
        dimension_numbers=("NCHW", "OIHW", "NCHW"),
        feature_group_count=C,
    ) + bias.reshape(1, C, 1, 1)
    return jnp.transpose(out.reshape(B, C, N), (0, 2, 1))


if __name__ == "__main__":
    # Small shapes consistent with MB_Block's depthwise stage (hidden_dim is a
    # multiple of 128 in CFRNet: dim * 4); channels chosen lane-dense.
    B, H, W, C = 2, 16, 16, 128
    N = H * W

    key = jax.random.PRNGKey(0)
    kx, kw, kb = jax.random.split(key, 3)
    x = jax.random.normal(kx, (B, N, C), dtype=jnp.float32)
    # nn.Conv2d(C, C, 3, 1, 1, groups=C) weight shape: (C, 1, 3, 3); bias: (C,)
    weight = jax.random.normal(kw, (C, 1, 3, 3), dtype=jnp.float32) * 0.1
    bias = jax.random.normal(kb, (C,), dtype=jnp.float32) * 0.1

    out = dwconv_pallas(x, weight, bias, H, W)
    out = jax.block_until_ready(out)

    ref = _reference_dwconv(x, weight, bias, H, W)
    assert out.shape == (B, N, C)
    assert jnp.allclose(out, ref, atol=1e-4, rtol=1e-4)

    print("KERNEL_OK")
</pallas_src>

<mosaic_0001>
module attributes {stable_mosaic.version = 11 : i64} {
  func.func @_dwconv_kernel(%arg0: i32, %arg1: i32, %arg2: memref<1x16x16x128xf32, #tpu.memory_space<vmem>>, %arg3: memref<9x128xf32, #tpu.memory_space<vmem>>, %arg4: memref<1x128xf32, #tpu.memory_space<vmem>>, %arg5: memref<1x16x16x128xf32, #tpu.memory_space<vmem>>, %arg6: memref<16x16x128xf32, #tpu.memory_space<vmem>>) attributes {dimension_semantics = [#tpu.dimension_semantics<parallel>, #tpu.dimension_semantics<parallel>], iteration_bounds = array<i64: 2, 1>, scalar_prefetch = 0 : i64, scratch_operands = 1 : i64, tpu.core_type = #tpu.core_type<tc>, window_params = [{transform_indices = @transform_0, window_bounds = array<i64: 1, 16, 16, 128>}, {transform_indices = @transform_1, window_bounds = array<i64: 9, 128>}, {transform_indices = @transform_2, window_bounds = array<i64: 1, 128>}, {transform_indices = @transform_3, window_bounds = array<i64: 1, 16, 16, 128>}]} {
    %c0 = arith.constant 0 : index
    %c0_0 = arith.constant 0 : index
    %0 = vector.load %arg3[%c0, %c0_0] : memref<9x128xf32, #tpu.memory_space<vmem>>, vector<9x128xf32>
    %c0_1 = arith.constant 0 : index
    %c0_2 = arith.constant 0 : index
    %1 = vector.load %arg4[%c0_1, %c0_2] : memref<1x128xf32, #tpu.memory_space<vmem>>, vector<1x128xf32>
    %2 = vector.shape_cast %1 : vector<1x128xf32> to vector<1x1x128xf32>
    %3 = vector.extract_strided_slice %0 {offsets = [4, 0], sizes = [1, 128], strides = [1, 1]} : vector<9x128xf32> to vector<1x128xf32>
    %4 = vector.shape_cast %3 : vector<1x128xf32> to vector<1x1x128xf32>
    %c0_3 = arith.constant 0 : index
    %c0_4 = arith.constant 0 : index
    %c0_5 = arith.constant 0 : index
    %c0_6 = arith.constant 0 : index
    %5 = vector.load %arg2[%c0_3, %c0_4, %c0_5, %c0_6] : memref<1x16x16x128xf32, #tpu.memory_space<vmem>>, vector<1x16x16x128xf32>
    %6 = vector.shape_cast %5 : vector<1x16x16x128xf32> to vector<16x16x128xf32>
    %7 = vector.broadcast %4 : vector<1x1x128xf32> to vector<16x16x128xf32>
    %8 = arith.mulf %6, %7 : vector<16x16x128xf32>
    %c0_7 = arith.constant 0 : index
    %c0_8 = arith.constant 0 : index
    %c0_9 = arith.constant 0 : index
    %9 = vector.load %arg6[%c0_7, %c0_8, %c0_9] : memref<16x16x128xf32, #tpu.memory_space<vmem>>, vector<16x16x128xf32>
    tpu.vector_store %arg6[%c0_7, %c0_8, %c0_9], %8 {strides = array<i32>} : memref<16x16x128xf32, #tpu.memory_space<vmem>>, vector<16x16x128xf32>,
    %c0_10 = arith.constant 0 : index
    %c0_11 = arith.constant 0 : index
    %c0_12 = arith.constant 0 : index
    %c0_13 = arith.constant 0 : index
    %10 = vector.load %arg2[%c0_10, %c0_11, %c0_12, %c0_13] : memref<1x16x16x128xf32, #tpu.memory_space<vmem>>, vector<1x15x15x128xf32>
    %11 = vector.shape_cast %10 : vector<1x15x15x128xf32> to vector<15x15x128xf32>
    %12 = vector.extract_strided_slice %0 {offsets = [0, 0], sizes = [1, 128], strides = [1, 1]} : vector<9x128xf32> to vector<1x128xf32>
    %13 = vector.shape_cast %12 : vector<1x128xf32> to vector<1x1x128xf32>
    %c1 = arith.constant 1 : index
    %c1_14 = arith.constant 1 : index
    %c0_15 = arith.constant 0 : index
    %14 = vector.load %arg6[%c1, %c1_14, %c0_15] : memref<16x16x128xf32, #tpu.memory_space<vmem>>, vector<15x15x128xf32>
    %15 = vector.broadcast %13 : vector<1x1x128xf32> to vector<15x15x128xf32>
    %16 = arith.mulf %11, %15 : vector<15x15x128xf32>
    %17 = arith.addf %14, %16 : vector<15x15x128xf32>
    %c1_16 = arith.constant 1 : index
    %c1_17 = arith.constant 1 : index
    %c0_18 = arith.constant 0 : index
    %18 = vector.load %arg6[%c1_16, %c1_17, %c0_18] : memref<16x16x128xf32, #tpu.memory_space<vmem>>, vector<15x15x128xf32>
    tpu.vector_store %arg6[%c1_16, %c1_17, %c0_18], %17 {strides = array<i32>} : memref<16x16x128xf32, #tpu.memory_space<vmem>>, vector<15x15x128xf32>,
    %c0_19 = arith.constant 0 : index
    %c0_20 = arith.constant 0 : index
    %c0_21 = arith.constant 0 : index
    %c0_22 = arith.constant 0 : index
    %19 = vector.load %arg2[%c0_19, %c0_20, %c0_21, %c0_22] : memref<1x16x16x128xf32, #tpu.memory_space<vmem>>, vector<1x15x16x128xf32>
    %20 = vector.shape_cast %19 : vector<1x15x16x128xf32> to vector<15x16x128xf32>
    %21 = vector.extract_strided_slice %0 {offsets = [1, 0], sizes = [1, 128], strides = [1, 1]} : vector<9x128xf32> to vector<1x128xf32>
    %22 = vector.shape_cast %21 : vector<1x128xf32> to vector<1x1x128xf32>
    %c1_23 = arith.constant 1 : index
    %c0_24 = arith.constant 0 : index
    %c0_25 = arith.constant 0 : index
    %23 = vector.load %arg6[%c1_23, %c0_24, %c0_25] : memref<16x16x128xf32, #tpu.memory_space<vmem>>, vector<15x16x128xf32>
    %24 = vector.broadcast %22 : vector<1x1x128xf32> to vector<15x16x128xf32>
    %25 = arith.mulf %20, %24 : vector<15x16x128xf32>
    %26 = arith.addf %23, %25 : vector<15x16x128xf32>
    %c1_26 = arith.constant 1 : index
    %c0_27 = arith.constant 0 : index
    %c0_28 = arith.constant 0 : index
    %27 = vector.load %arg6[%c1_26, %c0_27, %c0_28] : memref<16x16x128xf32, #tpu.memory_space<vmem>>, vector<15x16x128xf32>
    tpu.vector_store %arg6[%c1_26, %c0_27, %c0_28], %26 {strides = array<i32>} : memref<16x16x128xf32, #tpu.memory_space<vmem>>, vector<15x16x128xf32>,
    %c0_29 = arith.constant 0 : index
    %c0_30 = arith.constant 0 : index
    %c1_31 = arith.constant 1 : index
    %c0_32 = arith.constant 0 : index
    %28 = vector.load %arg2[%c0_29, %c0_30, %c1_31, %c0_32] : memref<1x16x16x128xf32, #tpu.memory_space<vmem>>, vector<1x15x15x128xf32>
    %29 = vector.shape_cast %28 : vector<1x15x15x128xf32> to vector<15x15x128xf32>
    %30 = vector.extract_strided_slice %0 {offsets = [2, 0], sizes = [1, 128], strides = [1, 1]} : vector<9x128xf32> to vector<1x128xf32>
    %31 = vector.shape_cast %30 : vector<1x128xf32> to vector<1x1x128xf32>
    %c1_33 = arith.constant 1 : index
    %c0_34 = arith.constant 0 : index
    %c0_35 = arith.constant 0 : index
    %32 = vector.load %arg6[%c1_33, %c0_34, %c0_35] : memref<16x16x128xf32, #tpu.memory_space<vmem>>, vector<15x15x128xf32>
    %33 = vector.broadcast %31 : vector<1x1x128xf32> to vector<15x15x128xf32>
    %34 = arith.mulf %29, %33 : vector<15x15x128xf32>
    %35 = arith.addf %32, %34 : vector<15x15x128xf32>
    %c1_36 = arith.constant 1 : index
    %c0_37 = arith.constant 0 : index
    %c0_38 = arith.constant 0 : index
    %36 = vector.load %arg6[%c1_36, %c0_37, %c0_38] : memref<16x16x128xf32, #tpu.memory_space<vmem>>, vector<15x15x128xf32>
    tpu.vector_store %arg6[%c1_36, %c0_37, %c0_38], %35 {strides = array<i32>} : memref<16x16x128xf32, #tpu.memory_space<vmem>>, vector<15x15x128xf32>,
    %c0_39 = arith.constant 0 : index
    %c0_40 = arith.constant 0 : index
    %c0_41 = arith.constant 0 : index
    %c0_42 = arith.constant 0 : index
    %37 = vector.load %arg2[%c0_39, %c0_40, %c0_41, %c0_42] : memref<1x16x16x128xf32, #tpu.memory_space<vmem>>, vector<1x16x15x128xf32>
    %38 = vector.shape_cast %37 : vector<1x16x15x128xf32> to vector<16x15x128xf32>
    %39 = vector.extract_strided_slice %0 {offsets = [3, 0], sizes = [1, 128], strides = [1, 1]} : vector<9x128xf32> to vector<1x128xf32>
    %40 = vector.shape_cast %39 : vector<1x128xf32> to vector<1x1x128xf32>
    %c0_43 = arith.constant 0 : index
    %c1_44 = arith.constant 1 : index
    %c0_45 = arith.constant 0 : index
    %41 = vector.load %arg6[%c0_43, %c1_44, %c0_45] : memref<16x16x128xf32, #tpu.memory_space<vmem>>, vector<16x15x128xf32>
    %42 = vector.broadcast %40 : vector<1x1x128xf32> to vector<16x15x128xf32>
    %43 = arith.mulf %38, %42 : vector<16x15x128xf32>
    %44 = arith.addf %41, %43 : vector<16x15x128xf32>
    %c0_46 = arith.constant 0 : index
    %c1_47 = arith.constant 1 : index
    %c0_48 = arith.constant 0 : index
    %45 = vector.load %arg6[%c0_46, %c1_47, %c0_48] : memref<16x16x128xf32, #tpu.memory_space<vmem>>, vector<16x15x128xf32>
    tpu.vector_store %arg6[%c0_46, %c1_47, %c0_48], %44 {strides = array<i32>} : memref<16x16x128xf32, #tpu.memory_space<vmem>>, vector<16x15x128xf32>,
    %c0_49 = arith.constant 0 : index
    %c0_50 = arith.constant 0 : index
    %c1_51 = arith.constant 1 : index
    %c0_52 = arith.constant 0 : index
    %46 = vector.load %arg2[%c0_49, %c0_50, %c1_51, %c0_52] : memref<1x16x16x128xf32, #tpu.memory_space<vmem>>, vector<1x16x15x128xf32>
    %47 = vector.shape_cast %46 : vector<1x16x15x128xf32> to vector<16x15x128xf32>
    %48 = vector.extract_strided_slice %0 {offsets = [5, 0], sizes = [1, 128], strides = [1, 1]} : vector<9x128xf32> to vector<1x128xf32>
    %49 = vector.shape_cast %48 : vector<1x128xf32> to vector<1x1x128xf32>
    %c0_53 = arith.constant 0 : index
    %c0_54 = arith.constant 0 : index
    %c0_55 = arith.constant 0 : index
    %50 = vector.load %arg6[%c0_53, %c0_54, %c0_55] : memref<16x16x128xf32, #tpu.memory_space<vmem>>, vector<16x15x128xf32>
    %51 = vector.broadcast %49 : vector<1x1x128xf32> to vector<16x15x128xf32>
    %52 = arith.mulf %47, %51 : vector<16x15x128xf32>
    %53 = arith.addf %50, %52 : vector<16x15x128xf32>
    %c0_56 = arith.constant 0 : index
    %c0_57 = arith.constant 0 : index
    %c0_58 = arith.constant 0 : index
    %54 = vector.load %arg6[%c0_56, %c0_57, %c0_58] : memref<16x16x128xf32, #tpu.memory_space<vmem>>, vector<16x15x128xf32>
    tpu.vector_store %arg6[%c0_56, %c0_57, %c0_58], %53 {strides = array<i32>} : memref<16x16x128xf32, #tpu.memory_space<vmem>>, vector<16x15x128xf32>,
    %c0_59 = arith.constant 0 : index
    %c1_60 = arith.constant 1 : index
    %c0_61 = arith.constant 0 : index
    %c0_62 = arith.constant 0 : index
    %55 = vector.load %arg2[%c0_59, %c1_60, %c0_61, %c0_62] : memref<1x16x16x128xf32, #tpu.memory_space<vmem>>, vector<1x15x15x128xf32>
    %56 = vector.shape_cast %55 : vector<1x15x15x128xf32> to vector<15x15x128xf32>
    %57 = vector.extract_strided_slice %0 {offsets = [6, 0], sizes = [1, 128], strides = [1, 1]} : vector<9x128xf32> to vector<1x128xf32>
    %58 = vector.shape_cast %57 : vector<1x128xf32> to vector<1x1x128xf32>
    %c0_63 = arith.constant 0 : index
    %c1_64 = arith.constant 1 : index
    %c0_65 = arith.constant 0 : index
    %59 = vector.load %arg6[%c0_63, %c1_64, %c0_65] : memref<16x16x128xf32, #tpu.memory_space<vmem>>, vector<15x15x128xf32>
    %60 = vector.broadcast %58 : vector<1x1x128xf32> to vector<15x15x128xf32>
    %61 = arith.mulf %56, %60 : vector<15x15x128xf32>
    %62 = arith.addf %59, %61 : vector<15x15x128xf32>
    %c0_66 = arith.constant 0 : index
    %c1_67 = arith.constant 1 : index
    %c0_68 = arith.constant 0 : index
    %63 = vector.load %arg6[%c0_66, %c1_67, %c0_68] : memref<16x16x128xf32, #tpu.memory_space<vmem>>, vector<15x15x128xf32>
    tpu.vector_store %arg6[%c0_66, %c1_67, %c0_68], %62 {strides = array<i32>} : memref<16x16x128xf32, #tpu.memory_space<vmem>>, vector<15x15x128xf32>,
    %c0_69 = arith.constant 0 : index
    %c1_70 = arith.constant 1 : index
    %c0_71 = arith.constant 0 : index
    %c0_72 = arith.constant 0 : index
    %64 = vector.load %arg2[%c0_69, %c1_70, %c0_71, %c0_72] : memref<1x16x16x128xf32, #tpu.memory_space<vmem>>, vector<1x15x16x128xf32>
    %65 = vector.shape_cast %64 : vector<1x15x16x128xf32> to vector<15x16x128xf32>
    %66 = vector.extract_strided_slice %0 {offsets = [7, 0], sizes = [1, 128], strides = [1, 1]} : vector<9x128xf32> to vector<1x128xf32>
    %67 = vector.shape_cast %66 : vector<1x128xf32> to vector<1x1x128xf32>
    %c0_73 = arith.constant 0 : index
    %c0_74 = arith.constant 0 : index
    %c0_75 = arith.constant 0 : index
    %68 = vector.load %arg6[%c0_73, %c0_74, %c0_75] : memref<16x16x128xf32, #tpu.memory_space<vmem>>, vector<15x16x128xf32>
    %69 = vector.broadcast %67 : vector<1x1x128xf32> to vector<15x16x128xf32>
    %70 = arith.mulf %65, %69 : vector<15x16x128xf32>
    %71 = arith.addf %68, %70 : vector<15x16x128xf32>
    %c0_76 = arith.constant 0 : index
    %c0_77 = arith.constant 0 : index
    %c0_78 = arith.constant 0 : index
    %72 = vector.load %arg6[%c0_76, %c0_77, %c0_78] : memref<16x16x128xf32, #tpu.memory_space<vmem>>, vector<15x16x128xf32>
    tpu.vector_store %arg6[%c0_76, %c0_77, %c0_78], %71 {strides = array<i32>} : memref<16x16x128xf32, #tpu.memory_space<vmem>>, vector<15x16x128xf32>,
    %c0_79 = arith.constant 0 : index
    %c1_80 = arith.constant 1 : index
    %c1_81 = arith.constant 1 : index
    %c0_82 = arith.constant 0 : index
    %73 = vector.load %arg2[%c0_79, %c1_80, %c1_81, %c0_82] : memref<1x16x16x128xf32, #tpu.memory_space<vmem>>, vector<1x15x15x128xf32>
    %74 = vector.shape_cast %73 : vector<1x15x15x128xf32> to vector<15x15x128xf32>
    %75 = vector.extract_strided_slice %0 {offsets = [8, 0], sizes = [1, 128], strides = [1, 1]} : vector<9x128xf32> to vector<1x128xf32>
    %76 = vector.shape_cast %75 : vector<1x128xf32> to vector<1x1x128xf32>
    %c0_83 = arith.constant 0 : index
    %c0_84 = arith.constant 0 : index
    %c0_85 = arith.constant 0 : index
    %77 = vector.load %arg6[%c0_83, %c0_84, %c0_85] : memref<16x16x128xf32, #tpu.memory_space<vmem>>, vector<15x15x128xf32>
    %78 = vector.broadcast %76 : vector<1x1x128xf32> to vector<15x15x128xf32>
    %79 = arith.mulf %74, %78 : vector<15x15x128xf32>
    %80 = arith.addf %77, %79 : vector<15x15x128xf32>
    %c0_86 = arith.constant 0 : index
    %c0_87 = arith.constant 0 : index
    %c0_88 = arith.constant 0 : index
    %81 = vector.load %arg6[%c0_86, %c0_87, %c0_88] : memref<16x16x128xf32, #tpu.memory_space<vmem>>, vector<15x15x128xf32>
    tpu.vector_store %arg6[%c0_86, %c0_87, %c0_88], %80 {strides = array<i32>} : memref<16x16x128xf32, #tpu.memory_space<vmem>>, vector<15x15x128xf32>,
    %c0_89 = arith.constant 0 : index
    %c0_90 = arith.constant 0 : index
    %c0_91 = arith.constant 0 : index
    %82 = vector.load %arg6[%c0_89, %c0_90, %c0_91] : memref<16x16x128xf32, #tpu.memory_space<vmem>>, vector<16x16x128xf32>
    %83 = vector.broadcast %2 : vector<1x1x128xf32> to vector<16x16x128xf32>
    %84 = arith.addf %82, %83 : vector<16x16x128xf32>
    %c0_92 = arith.constant 0 : index
    %c0_93 = arith.constant 0 : index
    %c0_94 = arith.constant 0 : index
    %c0_95 = arith.constant 0 : index
    %85 = vector.load %arg5[%c0_92, %c0_93, %c0_94, %c0_95] : memref<1x16x16x128xf32, #tpu.memory_space<vmem>>, vector<1x16x16x128xf32>
    %86 = vector.shape_cast %85 : vector<1x16x16x128xf32> to vector<16x16x128xf32>
    %87 = vector.shape_cast %84 : vector<16x16x128xf32> to vector<1x16x16x128xf32>
    tpu.vector_store %arg5[%c0_92, %c0_93, %c0_94, %c0_95], %87 {strides = array<i32>} : memref<1x16x16x128xf32, #tpu.memory_space<vmem>>, vector<1x16x16x128xf32>,
    return
  }
  func.func @transform_0(%arg0: i32, %arg1: i32) -> (i32, i32, i32, i32) {
    %c0_i32 = arith.constant 0 : i32
    %c0_i32_0 = arith.constant 0 : i32
    %c0_i32_1 = arith.constant 0 : i32
    return %arg0, %c0_i32, %c0_i32_0, %arg1 : i32, i32, i32, i32
  }
  func.func @transform_1(%arg0: i32, %arg1: i32) -> (i32, i32) {
    %c0_i32 = arith.constant 0 : i32
    %c0_i32_0 = arith.constant 0 : i32
    return %c0_i32, %arg1 : i32, i32
  }
  func.func @transform_2(%arg0: i32, %arg1: i32) -> (i32, i32) {
    %c0_i32 = arith.constant 0 : i32
    %c0_i32_0 = arith.constant 0 : i32
    return %c0_i32, %arg1 : i32, i32
  }
  func.func @transform_3(%arg0: i32, %arg1: i32) -> (i32, i32, i32, i32) {
    %c0_i32 = arith.constant 0 : i32
    %c0_i32_0 = arith.constant 0 : i32
    %c0_i32_1 = arith.constant 0 : i32
    return %arg0, %c0_i32, %c0_i32_0, %arg1 : i32, i32, i32, i32
  }
}

</mosaic_0001>

<llo_original>
// kernel: tpu_custom_call.1
$region0: #{tpu_custom_call.1}
  #allocation0 [shape = 'u32[]', space=smem, size = 0x4, offset = 0x4, fixed_abs, tag = 'smem constant byte address 0x4 - core index']
  #allocation1 [shape = 'u32[144,128]{1,0:T(1,128)}', space=vmem, size = 0x12000, scoped, tag = 'internal scratch']
  #allocation2 [shape = 'f32[16,16,128]{2,1,0:T(8,128)}', space=vmem, size = 0x20000, scoped, tag = 'scratch operand']
  %s0 = inlined_call_operand.hbm [shape: f32[2,16,16,128], index: 0, kind: input, shape index: {}]
  %s1 = inlined_call_operand.hbm [shape: f32[9,128], index: 1, kind: input, shape index: {}]
  %s2 = inlined_call_operand.hbm [shape: f32[1,128], index: 2, kind: input, shape index: {}]
  %s3 = inlined_call_operand.hbm [shape: f32[2,16,16,128], index: 3, kind: output, shape index: {}]
  %s4 = sld [smem:[#allocation0]]
  $region57: #{tpu_custom_call.1} parent=0
    _
  %s6 = ssub.s32 1, %s4
  %s7 = scalar_select 0, %s6, %s4
  $region1: #{tpu_custom_call.1} parent=0
    #allocation3 [shape = 'u8[262144]{0}', space=vmem, size = 0x40000, scoped, tag = 'input window, operand 0']
    #allocation4 [shape = 's32[2]{0}', space=sflag, size = 0x8, scoped, tag = 'scoped memory for tpu_custom_call.1']
    #allocation5 [shape = 's32[2]{0}', space=sflag, size = 0x8, scoped, tag = 'scoped memory for tpu_custom_call.1']
    #allocation6 [shape = 'u8[8192]{0}', space=vmem, size = 0x2000, scoped, tag = 'input window, operand 1, single buffered']
    #allocation7 [shape = 's32[1]{0}', space=sflag, size = 0x4, scoped, tag = 'scoped memory for tpu_custom_call.1']
    #allocation8 [shape = 'u8[512]{0}', space=vmem, size = 0x400, scoped, tag = 'input window, operand 2, single buffered']
    #allocation9 [shape = 'u8[262144]{0}', space=vmem, size = 0x40000, scoped, tag = 'output window, operand 0']
    %8 = vsyncpa [#allocation4], 0
    %s9 = scalar_lea.sflag [#allocation4], 1
    %10 = vsyncpa %s9, 0
    %11 = vsyncpa [#allocation7], 0
    %12 = vsyncpa [#allocation5], 0
    %s13 = scalar_lea.sflag [#allocation5], 1
    %14 = vsyncpa %s13, 0
    loop: start=0, step=1, limit=4
    $region2: #{tpu_custom_call.1} parent=1 // loop_pre_header
      _
    $region3: #{tpu_custom_call.1} parent=1 // loop_header
      %s16 = sphi 0, %s20
      %p17 = scmp.ge.s32.totalorder %s16, 4
      %s23 = sphi 0, %s35
      %s24 = sphi 0, %s31
      %s25 = sphi 0, %s23
      %s26 = sphi 0, %s24
      %s27 = sphi 0, %s25
      %s28 = sphi 0, %s26
      %s40 = sphi 0, %s42
      %s43 = sphi 0, %s40
      %s44 = sphi 0, %s43
      %s60 = sphi 0, %s44
      %s66 = sphi 0, %s68
      %s69 = sphi 0, %s66
      %s70 = sphi 0, %s69
      %s86 = sphi 0, %s70
      %s92 = sphi 0, %s94
      %s95 = sphi 0, %s92
      %s96 = sphi 0, %s95
      %s112 = sphi 0, %s96
      %s120 = sphi 0, %s122
      %s123 = sphi 0, %s120
      %s124 = sphi 0, %s123
      %s140 = sphi 0, %s124
    $region4: #{tpu_custom_call.1} parent=1 // loop_header_branch
      %19 = sbr.rel (%p17) target = $region8
    $region5: #{tpu_custom_call.1} parent=1 // loop_body
      %s21 = ssub.s32 %s16, 1
      %s22 = ssub.s32 %s16, 2
      %s29 = sadd.s32 1, %s24
      %p30 = scmp.ge.s32.totalorder %s29, 1
      %s31 = scalar_select %p30, 0, %s29
      %s32 = sadd.s32 1, %s23
      %s33 = scalar_select %p30, %s32, %s23
      %p34 = scmp.ge.s32.totalorder %s33, 2
      %s35 = scalar_select %p34, 0, %s33
      %s36 = ssub.s32 %s23, %s35
      %s37 = ssub.s32 %s24, %s31
      %s38 = sor.u32 %s36, %s37
      %p39 = scmp.eq.s32.totalorder %s38, 0
      %s41 = sadd.s32 %s40, 1
      %s42 = scalar_select %p39, %s40, %s41
      %p45 = pneg %p39
      %p46 = scmp.eq.s32.totalorder %s16, 1
      %p47 = por %p45, %p46
      %p48 = scmp.ne.s32.totalorder %s40, %s43
      %p49 = scmp.eq.s32.totalorder %s16, 0
      %p50 = por %p48, %p49
      %p51 = scmp.ne.s32.totalorder %s40, %s43
      %p52 = scmp.eq.s32.totalorder %s21, 1
      %p53 = por %p51, %p52
      %p54 = scmp.ne.s32.totalorder %s43, %s44
      %p55 = scmp.eq.s32.totalorder %s21, 0
      %p56 = por %p54, %p55
      %p57 = scmp.ne.s32.totalorder %s43, %s44
      %p58 = scmp.eq.s32.totalorder %s22, 1
      %p59 = por %p57, %p58
      %p61 = scmp.ne.s32.totalorder %s44, %s60
      %p62 = scmp.eq.s32.totalorder %s22, 0
      %p63 = por %p61, %p62
      %s64 = ssub.s32 %s24, %s31
      %p65 = scmp.eq.s32.totalorder %s64, 0
      %s67 = sadd.s32 %s66, 1
      %s68 = scalar_select %p65, %s66, %s67
      %p71 = pneg %p65
      %p72 = scmp.eq.s32.totalorder %s16, 1
      %p73 = por %p71, %p72
      %p74 = scmp.ne.s32.totalorder %s66, %s69
      %p75 = scmp.eq.s32.totalorder %s16, 0
      %p76 = por %p74, %p75
      %p77 = scmp.ne.s32.totalorder %s66, %s69
      %p78 = scmp.eq.s32.totalorder %s21, 1
      %p79 = por %p77, %p78
      %p80 = scmp.ne.s32.totalorder %s69, %s70
      %p81 = scmp.eq.s32.totalorder %s21, 0
      %p82 = por %p80, %p81
      %p83 = scmp.ne.s32.totalorder %s69, %s70
      %p84 = scmp.eq.s32.totalorder %s22, 1
      %p85 = por %p83, %p84
      %p87 = scmp.ne.s32.totalorder %s70, %s86
      %p88 = scmp.eq.s32.totalorder %s22, 0
      %p89 = por %p87, %p88
      %s90 = ssub.s32 %s24, %s31
      %p91 = scmp.eq.s32.totalorder %s90, 0
      %s93 = sadd.s32 %s92, 1
      %s94 = scalar_select %p91, %s92, %s93
      %p97 = pneg %p91
      %p98 = scmp.eq.s32.totalorder %s16, 1
      %p99 = por %p97, %p98
      %p100 = scmp.ne.s32.totalorder %s92, %s95
      %p101 = scmp.eq.s32.totalorder %s16, 0
      %p102 = por %p100, %p101
      %p103 = scmp.ne.s32.totalorder %s92, %s95
      %p104 = scmp.eq.s32.totalorder %s21, 1
      %p105 = por %p103, %p104
      %p106 = scmp.ne.s32.totalorder %s95, %s96
      %p107 = scmp.eq.s32.totalorder %s21, 0
      %p108 = por %p106, %p107
      %p109 = scmp.ne.s32.totalorder %s95, %s96
      %p110 = scmp.eq.s32.totalorder %s22, 1
      %p111 = por %p109, %p110
      %p113 = scmp.ne.s32.totalorder %s96, %s112
      %p114 = scmp.eq.s32.totalorder %s22, 0
      %p115 = por %p113, %p114
      %s116 = ssub.s32 %s23, %s35
      %s117 = ssub.s32 %s24, %s31
      %s118 = sor.u32 %s116, %s117
      %p119 = scmp.eq.s32.totalorder %s118, 0
      %s121 = sadd.s32 %s120, 1
      %s122 = scalar_select %p119, %s120, %s121
      %p125 = pneg %p119
      %p126 = scmp.eq.s32.totalorder %s16, 1
      %p127 = por %p125, %p126
      %p128 = scmp.ne.s32.totalorder %s120, %s123
      %p129 = scmp.eq.s32.totalorder %s16, 0
      %p130 = por %p128, %p129
      %p131 = scmp.ne.s32.totalorder %s120, %s123
      %p132 = scmp.eq.s32.totalorder %s21, 1
      %p133 = por %p131, %p132
      %p134 = scmp.ne.s32.totalorder %s123, %s124
      %p135 = scmp.eq.s32.totalorder %s21, 0
      %p136 = por %p134, %p135
      %p137 = scmp.ne.s32.totalorder %s123, %s124
      %p138 = scmp.eq.s32.totalorder %s22, 1
      %p139 = por %p137, %p138
      %p141 = scmp.ne.s32.totalorder %s124, %s140
      %p142 = scmp.eq.s32.totalorder %s22, 0
      %p143 = por %p141, %p142
      %p144 = scmp.le.s32.totalorder 1, %s16
      %p145 = scmp.lt.s32.totalorder %s16, 3
      %p146 = pnand %p144, %p145
      %p147 = pneg %p146
      // Predicated region
      $region9: #{tpu_custom_call.1} parent=5 // pred_check
        _
      $region10: #{tpu_custom_call.1} parent=5 // pred_check_branch
        %149 = sbr.rel (%p146) target = $region12
      $region11: #{tpu_custom_call.1} parent=5 // pred_region
        %s150 = ssub.s32 %s16, 1
        // Predicated region
        $region13: #{tpu_custom_call.1} parent=11 // pred_check
          %p151 = pneg %p82
        $region14: #{tpu_custom_call.1} parent=11 // pred_check_branch
          %153 = sbr.rel (%p151) target = $region16
        $region15: #{tpu_custom_call.1} parent=11 // pred_region
          %s155 = ssub.s32 256, 256
          %156 = vsyncadd [#allocation7], %s155
          %s157 = smul.addr %s26, 128
          %s158 = scalar_lea.hbm %s1, %s157
          %s159 = sshll.u32 [#allocation6], 4
          %s160 = int_to_ptr.vmem [resolvable:$true] %s159
          %165 = dma.hbm_to_vmem [thread:$0]  %s158, 256, %s160, [#allocation7], 128, 128, 8
        $region16: #{tpu_custom_call.1} parent=11 // pred_fallthru
          _
        // Predicated region
        $region17: #{tpu_custom_call.1} parent=11 // pred_check
          %p166 = pneg %p108
        $region18: #{tpu_custom_call.1} parent=11 // pred_check_branch
          %168 = sbr.rel (%p166) target = $region20
        $region19: #{tpu_custom_call.1} parent=11 // pred_region
          %s170 = ssub.s32 16, 16
          %171 = vsyncadd [#allocation7], %s170
          %s172 = smul.addr %s26, 16
          %s173 = scalar_lea.hbm %s2, %s172
          %s175 = sshll.u32 [#allocation8], 4
          %s176 = int_to_ptr.vmem [resolvable:$true] %s175
          %178 = dma.hbm_to_vmem [thread:$0]  %s173, 16, %s176, [#allocation7]
        $region20: #{tpu_custom_call.1} parent=11 // pred_fallthru
          _
      $region12: #{tpu_custom_call.1} parent=5 // pred_fallthru
        _
      %p179 = scmp.lt.s32.totalorder %s16, 2
      // Predicated region
      $region21: #{tpu_custom_call.1} parent=5 // pred_check
        %p180 = pneg %p179
      $region22: #{tpu_custom_call.1} parent=5 // pred_check_branch
        %182 = sbr.rel (%p180) target = $region24
      $region23: #{tpu_custom_call.1} parent=5 // pred_region
        // Predicated region
        $region25: #{tpu_custom_call.1} parent=23 // pred_check
          %p183 = pneg %p50
        $region26: #{tpu_custom_call.1} parent=23 // pred_check_branch
          %185 = sbr.rel (%p183) target = $region28
        $region27: #{tpu_custom_call.1} parent=23 // pred_region
          %s186 = sand.u32 %s40, 1
          %s187 = scalar_lea.sflag [#allocation4], %s186
          %s188 = sand.u32 %s40, 1
          %s189 = smul.addr %s188, 256
          %s190 = scalar_lea.vmem [#allocation3], %s189
          %s192 = ssub.s32 4096, 4096
          %193 = vsyncadd %s187, %s192
          %s194 = smul.addr %s23, 32
          %s195 = sadd.s32 %s24, %s194
          %s196 = smul.addr %s195, 128
          %s197 = scalar_lea.hbm %s0, %s196
          %s198 = sshll.u32 %s190, 4
          %s199 = int_to_ptr.vmem [resolvable:$true] %s198
          %204 = dma.hbm_to_vmem [thread:$0]  %s197, 4096, %s199, %s187, 128, 128, 8
        $region28: #{tpu_custom_call.1} parent=23 // pred_fallthru
          _
      $region24: #{tpu_custom_call.1} parent=5 // pred_fallthru
        _
      %p205 = scmp.le.s32.totalorder 1, %s16
      %p206 = scmp.lt.s32.totalorder %s16, 3
      %p207 = pnand %p205, %p206
      %p208 = pneg %p207
      // Predicated region
      $region29: #{tpu_custom_call.1} parent=5 // pred_check
        _
      $region30: #{tpu_custom_call.1} parent=5 // pred_check_branch
        %210 = sbr.rel (%p207) target = $region32
      $region31: #{tpu_custom_call.1} parent=5 // pred_region
        %s211 = ssub.s32 %s16, 1
        %s212 = sand.u32 %s43, 1
        %s213 = scalar_lea.sflag [#allocation4], %s212
        %s214 = sand.u32 %s43, 1
        %s215 = smul.addr %s214, 256
        %s216 = scalar_lea.vmem [#allocation3], %s215
        // Predicated region
        $region33: #{tpu_custom_call.1} parent=31 // pred_check
          %p217 = pneg %p56
        $region34: #{tpu_custom_call.1} parent=31 // pred_check_branch
          %219 = sbr.rel (%p217) target = $region36
        $region35: #{tpu_custom_call.1} parent=31 // pred_region
          %220 = dma.done %s213, 4096
        $region36: #{tpu_custom_call.1} parent=31 // pred_fallthru
          _
        // Predicated region
        $region37: #{tpu_custom_call.1} parent=31 // pred_check
          %p221 = pneg %p82
        $region38: #{tpu_custom_call.1} parent=31 // pred_check_branch
          %223 = sbr.rel (%p221) target = $region40
        $region39: #{tpu_custom_call.1} parent=31 // pred_region
          %224 = dma.done [#allocation7], 256
        $region40: #{tpu_custom_call.1} parent=31 // pred_fallthru
          _
        // Predicated region
        $region41: #{tpu_custom_call.1} parent=31 // pred_check
          %p225 = pneg %p108
        $region42: #{tpu_custom_call.1} parent=31 // pred_check_branch
          %227 = sbr.rel (%p225) target = $region44
        $region43: #{tpu_custom_call.1} parent=31 // pred_region
          %228 = dma.done [#allocation7], 16
        $region44: #{tpu_custom_call.1} parent=31 // pred_fallthru
          _
        %s229 = sand.u32 %s43, 1
        %s230 = scalar_lea.sflag [#allocation4], %s229
        %s231 = sand.u32 %s43, 1
        %s232 = smul.addr %s231, 256
        %s233 = scalar_lea.vmem [#allocation3], %s232
        %p234 = pneg %p56
        %p235 = pneg %p53
        %p236 = pneg %p82
        %p237 = pneg %p79
        %p238 = pneg %p108
        %p239 = pneg %p105
        %p240 = pneg %p136
        %p241 = pneg %p133
        %s242 = sand.u32 %s123, 1
        %s243 = scalar_lea.sflag [#allocation5], %s242
        %s244 = sand.u32 %s123, 1
        %s245 = smul.addr %s244, 256
        %s246 = scalar_lea.vmem [#allocation9], %s245
        %v247 = vld [vmem:[#allocation6] sm:$0xff]
        %v248 = vld [vmem:[#allocation6 + $0x8] sm:$0x1]
        %v249 = vld [vmem:[#allocation8] sm:$0x1]
        %v250 = vld [vmem:[%s216] sm:$0xff]
        %v251 = vld [vmem:[%s216 + $0x8] sm:$0xff]
        %v252 = vld [vmem:[%s216 + $0x10] sm:$0xff]
        %v253 = vld [vmem:[%s216 + $0x18] sm:$0xff]
        %v254 = vld [vmem:[%s216 + $0x20] sm:$0xff]
        %v255 = vld [vmem:[%s216 + $0x28] sm:$0xff]
        %v256 = vld [vmem:[%s216 + $0x30] sm:$0xff]
        %v257 = vld [vmem:[%s216 + $0x38] sm:$0xff]
        %v258 = vld [vmem:[%s216 + $0x40] sm:$0xff]
        %v259 = vld [vmem:[%s216 + $0x48] sm:$0xff]
        %v260 = vld [vmem:[%s216 + $0x50] sm:$0xff]
        %v261 = vld [vmem:[%s216 + $0x58] sm:$0xff]
        %v262 = vld [vmem:[%s216 + $0x60] sm:$0xff]
        %v263 = vld [vmem:[%s216 + $0x68] sm:$0xff]
        %v264 = vld [vmem:[%s216 + $0x70] sm:$0xff]
        %v265 = vld [vmem:[%s216 + $0x78] sm:$0xff]
        %v266 = vld [vmem:[%s216 + $0x80] sm:$0xff]
        %v267 = vld [vmem:[%s216 + $0x88] sm:$0xff]
        %v268 = vld [vmem:[%s216 + $0x90] sm:$0xff]
        %v269 = vld [vmem:[%s216 + $0x98] sm:$0xff]
        %v270 = vld [vmem:[%s216 + $0xa0] sm:$0xff]
        %v271 = vld [vmem:[%s216 + $0xa8] sm:$0xff]
        %v272 = vld [vmem:[%s216 + $0xb0] sm:$0xff]
        %v273 = vld [vmem:[%s216 + $0xb8] sm:$0xff]
        %v274 = vld [vmem:[%s216 + $0xc0] sm:$0xff]
        %v275 = vld [vmem:[%s216 + $0xc8] sm:$0xff]
        %v276 = vld [vmem:[%s216 + $0xd0] sm:$0xff]
        %v277 = vld [vmem:[%s216 + $0xd8] sm:$0xff]
        %v278 = vld [vmem:[%s216 + $0xe0] sm:$0xff]
        %v279 = vld [vmem:[%s216 + $0xe8] sm:$0xff]
        %v280 = vld [vmem:[%s216 + $0xf0] sm:$0xff]
        %v281 = vld [vmem:[%s216 + $0xf8] sm:$0xff]
        %v282 = vlaneseq
        %v283 = vshrl.u32 %v282, 7
        %v284 = vsub.s32 4, %v283
        %v285 = vrot.slane %v247, %v284
        %v286 = vmul.f32 %v250, %v285
        %v287 = vmul.f32 %v251, %v285
        %v288 = vmul.f32 %v252, %v285
        %v289 = vmul.f32 %v253, %v285
        %v290 = vmul.f32 %v254, %v285
        %v291 = vmul.f32 %v255, %v285
        %v292 = vmul.f32 %v256, %v285
        %v293 = vmul.f32 %v257, %v285
        %v294 = vmul.f32 %v258, %v285
        %v295 = vmul.f32 %v259, %v285
        %v296 = vmul.f32 %v260, %v285
        %v297 = vmul.f32 %v261, %v285
        %v298 = vmul.f32 %v262, %v285
        %v299 = vmul.f32 %v263, %v285
        %v300 = vmul.f32 %v264, %v285
        %v301 = vmul.f32 %v265, %v285
        %v302 = vmul.f32 %v266, %v285
        %v303 = vmul.f32 %v267, %v285
        %v304 = vmul.f32 %v268, %v285
        %v305 = vmul.f32 %v269, %v285
        %v306 = vmul.f32 %v270, %v285
        %v307 = vmul.f32 %v271, %v285
        %v308 = vmul.f32 %v272, %v285
        %v309 = vmul.f32 %v273, %v285
        %v310 = vmul.f32 %v274, %v285
        %v311 = vmul.f32 %v275, %v285
        %v312 = vmul.f32 %v276, %v285
        %v313 = vmul.f32 %v277, %v285
        %v314 = vmul.f32 %v278, %v285
        %v315 = vmul.f32 %v279, %v285
        %v316 = vmul.f32 %v280, %v285
        %v317 = vmul.f32 %v281, %v285
        %318 = vst [vmem:[#allocation2] sm:$0xff] %v286
        %319 = vst [vmem:[#allocation2 + $0x8] sm:$0xff] %v287
        %320 = vst [vmem:[#allocation2 + $0x10] sm:$0xff] %v288
        %321 = vst [vmem:[#allocation2 + $0x18] sm:$0xff] %v289
        %322 = vst [vmem:[#allocation2 + $0x20] sm:$0xff] %v290
        %323 = vst [vmem:[#allocation2 + $0x28] sm:$0xff] %v291
        %324 = vst [vmem:[#allocation2 + $0x30] sm:$0xff] %v292
        %325 = vst [vmem:[#allocation2 + $0x38] sm:$0xff] %v293
        %326 = vst [vmem:[#allocation2 + $0x40] sm:$0xff] %v294
        %327 = vst [vmem:[#allocation2 + $0x48] sm:$0xff] %v295
        %328 = vst [vmem:[#allocation2 + $0x50] sm:$0xff] %v296
        %329 = vst [vmem:[#allocation2 + $0x58] sm:$0xff] %v297
        %330 = vst [vmem:[#allocation2 + $0x60] sm:$0xff] %v298
        %331 = vst [vmem:[#allocation2 + $0x68] sm:$0xff] %v299
        %332 = vst [vmem:[#allocation2 + $0x70] sm:$0xff] %v300
        %333 = vst [vmem:[#allocation2 + $0x78] sm:$0xff] %v301
        %334 = vst [vmem:[#allocation2 + $0x80] sm:$0xff] %v302
        %335 = vst [vmem:[#allocation2 + $0x88] sm:$0xff] %v303
        %336 = vst [vmem:[#allocation2 + $0x90] sm:$0xff] %v304
        %337 = vst [vmem:[#allocation2 + $0x98] sm:$0xff] %v305
        %338 = vst [vmem:[#allocation2 + $0xa0] sm:$0xff] %v306
        %339 = vst [vmem:[#allocation2 + $0xa8] sm:$0xff] %v307
        %340 = vst [vmem:[#allocation2 + $0xb0] sm:$0xff] %v308
        %341 = vst [vmem:[#allocation2 + $0xb8] sm:$0xff] %v309
        %342 = vst [vmem:[#allocation2 + $0xc0] sm:$0xff] %v310
        %343 = vst [vmem:[#allocation2 + $0xc8] sm:$0xff] %v311
        %344 = vst [vmem:[#allocation2 + $0xd0] sm:$0xff] %v312
        %345 = vst [vmem:[#allocation2 + $0xd8] sm:$0xff] %v313
        %346 = vst [vmem:[#allocation2 + $0xe0] sm:$0xff] %v314
        %347 = vst [vmem:[#allocation2 + $0xe8] sm:$0xff] %v315
        %348 = vst [vmem:[#allocation2 + $0xf0] sm:$0xff] %v316
        %349 = vst [vmem:[#allocation2 + $0xf8] sm:$0xff] %v317
        %v350 = vld [vmem:[%s216] sm:$0xff]
        %v351 = vld [vmem:[%s216 + $0x8] sm:$0x7f]
        %v352 = vld [vmem:[%s216 + $0x10] sm:$0xff]
        %v353 = vld [vmem:[%s216 + $0x18] sm:$0x7f]
        %v354 = vld [vmem:[%s216 + $0x20] sm:$0xff]
        %v355 = vld [vmem:[%s216 + $0x28] sm:$0x7f]
        %v356 = vld [vmem:[%s216 + $0x30] sm:$0xff]
        %v357 = vld [vmem:[%s216 + $0x38] sm:$0x7f]
        %v358 = vld [vmem:[%s216 + $0x40] sm:$0xff]
        %v359 = vld [vmem:[%s216 + $0x48] sm:$0x7f]
        %v360 = vld [vmem:[%s216 + $0x50] sm:$0xff]
        %v361 = vld [vmem:[%s216 + $0x58] sm:$0x7f]
        %v362 = vld [vmem:[%s216 + $0x60] sm:$0xff]
        %v363 = vld [vmem:[%s216 + $0x68] sm:$0x7f]
        %v364 = vld [vmem:[%s216 + $0x70] sm:$0xff]
        %v365 = vld [vmem:[%s216 + $0x78] sm:$0x7f]
        %v366 = vld [vmem:[%s216 + $0x80] sm:$0xff]
        %v367 = vld [vmem:[%s216 + $0x88] sm:$0x7f]
        %v368 = vld [vmem:[%s216 + $0x90] sm:$0xff]
        %v369 = vld [vmem:[%s216 + $0x98] sm:$0x7f]
        %v370 = vld [vmem:[%s216 + $0xa0] sm:$0xff]
        %v371 = vld [vmem:[%s216 + $0xa8] sm:$0x7f]
        %v372 = vld [vmem:[%s216 + $0xb0] sm:$0xff]
        %v373 = vld [vmem:[%s216 + $0xb8] sm:$0x7f]
        %v374 = vld [vmem:[%s216 + $0xc0] sm:$0xff]
        %v375 = vld [vmem:[%s216 + $0xc8] sm:$0x7f]
        %v376 = vld [vmem:[%s216 + $0xd0] sm:$0xff]
        %v377 = vld [vmem:[%s216 + $0xd8] sm:$0x7f]
        %v378 = vld [vmem:[%s216 + $0xe0] sm:$0xff]
        %v379 = vld [vmem:[%s216 + $0xe8] sm:$0x7f]
        %s380 = scalar_lea.vmem [#allocation2], 16
        %v381 = vld [vmem:[%s380 + $0x1] sm:$0xff]
        %v382 = vld [vmem:[%s380 + $0x9] sm:$0x7f]
        %v383 = vld [vmem:[%s380 + $0x11] sm:$0xff]
        %v384 = vld [vmem:[%s380 + $0x19] sm:$0x7f]
        %v385 = vld [vmem:[%s380 + $0x21] sm:$0xff]
        %v386 = vld [vmem:[%s380 + $0x29] sm:$0x7f]
        %v387 = vld [vmem:[%s380 + $0x31] sm:$0xff]
        %v388 = vld [vmem:[%s380 + $0x39] sm:$0x7f]
        %v389 = vld [vmem:[%s380 + $0x41] sm:$0xff]
        %v390 = vld [vmem:[%s380 + $0x49] sm:$0x7f]
        %v391 = vld [vmem:[%s380 + $0x51] sm:$0xff]
        %v392 = vld [vmem:[%s380 + $0x59] sm:$0x7f]
        %v393 = vld [vmem:[%s380 + $0x61] sm:$0xff]
        %v394 = vld [vmem:[%s380 + $0x69] sm:$0x7f]
        %v395 = vld [vmem:[%s380 + $0x71] sm:$0xff]
        %v396 = vld [vmem:[%s380 + $0x79] sm:$0x7f]
        %v397 = vld [vmem:[%s380 + $0x81] sm:$0xff]
        %v398 = vld [vmem:[%s380 + $0x89] sm:$0x7f]
        %v399 = vld [vmem:[%s380 + $0x91] sm:$0xff]
        %v400 = vld [vmem:[%s380 + $0x99] sm:$0x7f]
        %v401 = vld [vmem:[%s380 + $0xa1] sm:$0xff]
        %v402 = vld [vmem:[%s380 + $0xa9] sm:$0x7f]
        %v403 = vld [vmem:[%s380 + $0xb1] sm:$0xff]
        %v404 = vld [vmem:[%s380 + $0xb9] sm:$0x7f]
        %v405 = vld [vmem:[%s380 + $0xc1] sm:$0xff]
        %v406 = vld [vmem:[%s380 + $0xc9] sm:$0x7f]
        %v407 = vld [vmem:[%s380 + $0xd1] sm:$0xff]
        %v408 = vld [vmem:[%s380 + $0xd9] sm:$0x7f]
        %v409 = vld [vmem:[%s380 + $0xe1] sm:$0xff]
        %v410 = vld [vmem:[%s380 + $0xe9] sm:$0x7f]
        %v411 = vlaneseq
        %v412 = vshrl.u32 %v411, 7
        %v413 = vsub.s32 0, %v412
        %v414 = vrot.slane %v247, %v413
        %v415 = vmul.f32 %v350, %v414
        %v416 = vmul.f32 %v351, %v414
        %v417 = vmul.f32 %v352, %v414
        %v418 = vmul.f32 %v353, %v414
        %v419 = vmul.f32 %v354, %v414
        %v420 = vmul.f32 %v355, %v414
        %v421 = vmul.f32 %v356, %v414
        %v422 = vmul.f32 %v357, %v414
        %v423 = vmul.f32 %v358, %v414
        %v424 = vmul.f32 %v359, %v414
        %v425 = vmul.f32 %v360, %v414
        %v426 = vmul.f32 %v361, %v414
        %v427 = vmul.f32 %v362, %v414
        %v428 = vmul.f32 %v363, %v414
        %v429 = vmul.f32 %v364, %v414
        %v430 = vmul.f32 %v365, %v414
        %v431 = vmul.f32 %v366, %v414
        %v432 = vmul.f32 %v367, %v414
        %v433 = vmul.f32 %v368, %v414
        %v434 = vmul.f32 %v369, %v414
        %v435 = vmul.f32 %v370, %v414
        %v436 = vmul.f32 %v371, %v414
        %v437 = vmul.f32 %v372, %v414
        %v438 = vmul.f32 %v373, %v414
        %v439 = vmul.f32 %v374, %v414
        %v440 = vmul.f32 %v375, %v414
        %v441 = vmul.f32 %v376, %v414
        %v442 = vmul.f32 %v377, %v414
        %v443 = vmul.f32 %v378, %v414
        %v444 = vmul.f32 %v379, %v414
        %v445 = vadd.f32 %v381, %v415
        %v446 = vadd.f32 %v382, %v416
        %v447 = vadd.f32 %v383, %v417
        %v448 = vadd.f32 %v384, %v418
        %v449 = vadd.f32 %v385, %v419
        %v450 = vadd.f32 %v386, %v420
        %v451 = vadd.f32 %v387, %v421
        %v452 = vadd.f32 %v388, %v422
        %v453 = vadd.f32 %v389, %v423
        %v454 = vadd.f32 %v390, %v424
        %v455 = vadd.f32 %v391, %v425
        %v456 = vadd.f32 %v392, %v426
        %v457 = vadd.f32 %v393, %v427
        %v458 = vadd.f32 %v394, %v428
        %v459 = vadd.f32 %v395, %v429
        %v460 = vadd.f32 %v396, %v430
        %v461 = vadd.f32 %v397, %v431
        %v462 = vadd.f32 %v398, %v432
        %v463 = vadd.f32 %v399, %v433
        %v464 = vadd.f32 %v400, %v434
        %v465 = vadd.f32 %v401, %v435
        %v466 = vadd.f32 %v402, %v436
        %v467 = vadd.f32 %v403, %v437
        %v468 = vadd.f32 %v404, %v438
        %v469 = vadd.f32 %v405, %v439
        %v470 = vadd.f32 %v406, %v440
        %v471 = vadd.f32 %v407, %v441
        %v472 = vadd.f32 %v408, %v442
        %v473 = vadd.f32 %v409, %v443
        %v474 = vadd.f32 %v410, %v444
        %475 = vst [vmem:[%s380 + $0x1] sm:$0xff] %v445
        %476 = vst [vmem:[%s380 + $0x9] sm:$0x7f] %v446
        %477 = vst [vmem:[%s380 + $0x11] sm:$0xff] %v447
        %478 = vst [vmem:[%s380 + $0x19] sm:$0x7f] %v448
        %479 = vst [vmem:[%s380 + $0x21] sm:$0xff] %v449
        %480 = vst [vmem:[%s380 + $0x29] sm:$0x7f] %v450
        %481 = vst [vmem:[%s380 + $0x31] sm:$0xff] %v451
        %482 = vst [vmem:[%s380 + $0x39] sm:$0x7f] %v452
        %483 = vst [vmem:[%s380 + $0x41] sm:$0xff] %v453
        %484 = vst [vmem:[%s380 + $0x49] sm:$0x7f] %v454
        %485 = vst [vmem:[%s380 + $0x51] sm:$0xff] %v455
        %486 = vst [vmem:[%s380 + $0x59] sm:$0x7f] %v456
        %487 = vst [vmem:[%s380 + $0x61] sm:$0xff] %v457
        %488 = vst [vmem:[%s380 + $0x69] sm:$0x7f] %v458
        %489 = vst [vmem:[%s380 + $0x71] sm:$0xff] %v459
        %490 = vst [vmem:[%s380 + $0x79] sm:$0x7f] %v460
        %491 = vst [vmem:[%s380 + $0x81] sm:$0xff] %v461
        %492 = vst [vmem:[%s380 + $0x89] sm:$0x7f] %v462
        %493 = vst [vmem:[%s380 + $0x91] sm:$0xff] %v463
        %494 = vst [vmem:[%s380 + $0x99] sm:$0x7f] %v464
        %495 = vst [vmem:[%s380 + $0xa1] sm:$0xff] %v465
        %496 = vst [vmem:[%s380 + $0xa9] sm:$0x7f] %v466
        %497 = vst [vmem:[%s380 + $0xb1] sm:$0xff] %v467
        %498 = vst [vmem:[%s380 + $0xb9] sm:$0x7f] %v468
        %499 = vst [vmem:[%s380 + $0xc1] sm:$0xff] %v469
        %500 = vst [vmem:[%s380 + $0xc9] sm:$0x7f] %v470
        %501 = vst [vmem:[%s380 + $0xd1] sm:$0xff] %v471
        %502 = vst [vmem:[%s380 + $0xd9] sm:$0x7f] %v472
        %503 = vst [vmem:[%s380 + $0xe1] sm:$0xff] %v473
        %504 = vst [vmem:[%s380 + $0xe9] sm:$0x7f] %v474
        %v505 = vld [vmem:[%s216] sm:$0xff]
        %v506 = vld [vmem:[%s216 + $0x8] sm:$0xff]
        %v507 = vld [vmem:[%s216 + $0x10] sm:$0xff]
        %v508 = vld [vmem:[%s216 + $0x18] sm:$0xff]
        %v509 = vld [vmem:[%s216 + $0x20] sm:$0xff]
        %v510 = vld [vmem:[%s216 + $0x28] sm:$0xff]
        %v511 = vld [vmem:[%s216 + $0x30] sm:$0xff]
        %v512 = vld [vmem:[%s216 + $0x38] sm:$0xff]
        %v513 = vld [vmem:[%s216 + $0x40] sm:$0xff]
        %v514 = vld [vmem:[%s216 + $0x48] sm:$0xff]
        %v515 = vld [vmem:[%s216 + $0x50] sm:$0xff]
        %v516 = vld [vmem:[%s216 + $0x58] sm:$0xff]
        %v517 = vld [vmem:[%s216 + $0x60] sm:$0xff]
        %v518 = vld [vmem:[%s216 + $0x68] sm:$0xff]
        %v519 = vld [vmem:[%s216 + $0x70] sm:$0xff]
        %v520 = vld [vmem:[%s216 + $0x78] sm:$0xff]
        %v521 = vld [vmem:[%s216 + $0x80] sm:$0xff]
        %v522 = vld [vmem:[%s216 + $0x88] sm:$0xff]
        %v523 = vld [vmem:[%s216 + $0x90] sm:$0xff]
        %v524 = vld [vmem:[%s216 + $0x98] sm:$0xff]
        %v525 = vld [vmem:[%s216 + $0xa0] sm:$0xff]
        %v526 = vld [vmem:[%s216 + $0xa8] sm:$0xff]
        %v527 = vld [vmem:[%s216 + $0xb0] sm:$0xff]
        %v528 = vld [vmem:[%s216 + $0xb8] sm:$0xff]
        %v529 = vld [vmem:[%s216 + $0xc0] sm:$0xff]
        %v530 = vld [vmem:[%s216 + $0xc8] sm:$0xff]
        %v531 = vld [vmem:[%s216 + $0xd0] sm:$0xff]
        %v532 = vld [vmem:[%s216 + $0xd8] sm:$0xff]
        %v533 = vld [vmem:[%s216 + $0xe0] sm:$0xff]
        %v534 = vld [vmem:[%s216 + $0xe8] sm:$0xff]
        %v535 = vld [vmem:[%s380] sm:$0xff]
        %v536 = vld [vmem:[%s380 + $0x8] sm:$0xff]
        %v537 = vld [vmem:[%s380 + $0x10] sm:$0xff]
        %v538 = vld [vmem:[%s380 + $0x18] sm:$0xff]
        %v539 = vld [vmem:[%s380 + $0x20] sm:$0xff]
        %v540 = vld [vmem:[%s380 + $0x28] sm:$0xff]
        %v541 = vld [vmem:[%s380 + $0x30] sm:$0xff]
        %v542 = vld [vmem:[%s380 + $0x38] sm:$0xff]
        %v543 = vld [vmem:[%s380 + $0x40] sm:$0xff]
        %v544 = vld [vmem:[%s380 + $0x48] sm:$0xff]
        %v545 = vld [vmem:[%s380 + $0x50] sm:$0xff]
        %v546 = vld [vmem:[%s380 + $0x58] sm:$0xff]
        %v547 = vld [vmem:[%s380 + $0x60] sm:$0xff]
        %v548 = vld [vmem:[%s380 + $0x68] sm:$0xff]
        %v549 = vld [vmem:[%s380 + $0x70] sm:$0xff]
        %v550 = vld [vmem:[%s380 + $0x78] sm:$0xff]
        %v551 = vld [vmem:[%s380 + $0x80] sm:$0xff]
        %v552 = vld [vmem:[%s380 + $0x88] sm:$0xff]
        %v553 = vld [vmem:[%s380 + $0x90] sm:$0xff]
        %v554 = vld [vmem:[%s380 + $0x98] sm:$0xff]
        %v555 = vld [vmem:[%s380 + $0xa0] sm:$0xff]
        %v556 = vld [vmem:[%s380 + $0xa8] sm:$0xff]
        %v557 = vld [vmem:[%s380 + $0xb0] sm:$0xff]
        %v558 = vld [vmem:[%s380 + $0xb8] sm:$0xff]
        %v559 = vld [vmem:[%s380 + $0xc0] sm:$0xff]
        %v560 = vld [vmem:[%s380 + $0xc8] sm:$0xff]
        %v561 = vld [vmem:[%s380 + $0xd0] sm:$0xff]
        %v562 = vld [vmem:[%s380 + $0xd8] sm:$0xff]
        %v563 = vld [vmem:[%s380 + $0xe0] sm:$0xff]
        %v564 = vld [vmem:[%s380 + $0xe8] sm:$0xff]
        %v565 = vlaneseq
        %v566 = vshrl.u32 %v565, 7
        %v567 = vsub.s32 1, %v566
        %v568 = vrot.slane %v247, %v567
        %v569 = vmul.f32 %v505, %v568
        %v570 = vmul.f32 %v506, %v568
        %v571 = vmul.f32 %v507, %v568
        %v572 = vmul.f32 %v508, %v568
        %v573 = vmul.f32 %v509, %v568
        %v574 = vmul.f32 %v510, %v568
        %v575 = vmul.f32 %v511, %v568
        %v576 = vmul.f32 %v512, %v568
        %v577 = vmul.f32 %v513, %v568
        %v578 = vmul.f32 %v514, %v568
        %v579 = vmul.f32 %v515, %v568
        %v580 = vmul.f32 %v516, %v568
        %v581 = vmul.f32 %v517, %v568
        %v582 = vmul.f32 %v518, %v568
        %v583 = vmul.f32 %v519, %v568
        %v584 = vmul.f32 %v520, %v568
        %v585 = vmul.f32 %v521, %v568
        %v586 = vmul.f32 %v522, %v568
        %v587 = vmul.f32 %v523, %v568
        %v588 = vmul.f32 %v524, %v568
        %v589 = vmul.f32 %v525, %v568
        %v590 = vmul.f32 %v526, %v568
        %v591 = vmul.f32 %v527, %v568
        %v592 = vmul.f32 %v528, %v568
        %v593 = vmul.f32 %v529, %v568
        %v594 = vmul.f32 %v530, %v568
        %v595 = vmul.f32 %v531, %v568
        %v596 = vmul.f32 %v532, %v568
        %v597 = vmul.f32 %v533, %v568
        %v598 = vmul.f32 %v534, %v568
        %v599 = vadd.f32 %v535, %v569
        %v600 = vadd.f32 %v536, %v570
        %v601 = vadd.f32 %v537, %v571
        %v602 = vadd.f32 %v538, %v572
        %v603 = vadd.f32 %v539, %v573
        %v604 = vadd.f32 %v540, %v574
        %v605 = vadd.f32 %v541, %v575
        %v606 = vadd.f32 %v542, %v576
        %v607 = vadd.f32 %v543, %v577
        %v608 = vadd.f32 %v544, %v578
        %v609 = vadd.f32 %v545, %v579
        %v610 = vadd.f32 %v546, %v580
        %v611 = vadd.f32 %v547, %v581
        %v612 = vadd.f32 %v548, %v582
        %v613 = vadd.f32 %v549, %v583
        %v614 = vadd.f32 %v550, %v584
        %v615 = vadd.f32 %v551, %v585
        %v616 = vadd.f32 %v552, %v586
        %v617 = vadd.f32 %v553, %v587
        %v618 = vadd.f32 %v554, %v588
        %v619 = vadd.f32 %v555, %v589
        %v620 = vadd.f32 %v556, %v590
        %v621 = vadd.f32 %v557, %v591
        %v622 = vadd.f32 %v558, %v592
        %v623 = vadd.f32 %v559, %v593
        %v624 = vadd.f32 %v560, %v594
        %v625 = vadd.f32 %v561, %v595
        %v626 = vadd.f32 %v562, %v596
        %v627 = vadd.f32 %v563, %v597
        %v628 = vadd.f32 %v564, %v598
        %629 = vst [vmem:[%s380] sm:$0xff] %v599
        %630 = vst [vmem:[%s380 + $0x8] sm:$0xff] %v600
        %631 = vst [vmem:[%s380 + $0x10] sm:$0xff] %v601
        %632 = vst [vmem:[%s380 + $0x18] sm:$0xff] %v602
        %633 = vst [vmem:[%s380 + $0x20] sm:$0xff] %v603
        %634 = vst [vmem:[%s380 + $0x28] sm:$0xff] %v604
        %635 = vst [vmem:[%s380 + $0x30] sm:$0xff] %v605
        %636 = vst [vmem:[%s380 + $0x38] sm:$0xff] %v606
        %637 = vst [vmem:[%s380 + $0x40] sm:$0xff] %v607
        %638 = vst [vmem:[%s380 + $0x48] sm:$0xff] %v608
        %639 = vst [vmem:[%s380 + $0x50] sm:$0xff] %v609
        %640 = vst [vmem:[%s380 + $0x58] sm:$0xff] %v610
        %641 = vst [vmem:[%s380 + $0x60] sm:$0xff] %v611
        %642 = vst [vmem:[%s380 + $0x68] sm:$0xff] %v612
        %643 = vst [vmem:[%s380 + $0x70] sm:$0xff] %v613
        %644 = vst [vmem:[%s380 + $0x78] sm:$0xff] %v614
        %645 = vst [vmem:[%s380 + $0x80] sm:$0xff] %v615
        %646 = vst [vmem:[%s380 + $0x88] sm:$0xff] %v616
        %647 = vst [vmem:[%s380 + $0x90] sm:$0xff] %v617
        %648 = vst [vmem:[%s380 + $0x98] sm:$0xff] %v618
        %649 = vst [vmem:[%s380 + $0xa0] sm:$0xff] %v619
        %650 = vst [vmem:[%s380 + $0xa8] sm:$0xff] %v620
        %651 = vst [vmem:[%s380 + $0xb0] sm:$0xff] %v621
        %652 = vst [vmem:[%s380 + $0xb8] sm:$0xff] %v622
        %653 = vst [vmem:[%s380 + $0xc0] sm:$0xff] %v623
        %654 = vst [vmem:[%s380 + $0xc8] sm:$0xff] %v624
        %655 = vst [vmem:[%s380 + $0xd0] sm:$0xff] %v625
        %656 = vst [vmem:[%s380 + $0xd8] sm:$0xff] %v626
        %657 = vst [vmem:[%s380 + $0xe0] sm:$0xff] %v627
        %658 = vst [vmem:[%s380 + $0xe8] sm:$0xff] %v628
        %v659 = vld [vmem:[%s216 + $0x1] sm:$0xff]
        %v660 = vld [vmem:[%s216 + $0x9] sm:$0x7f]
        %v661 = vld [vmem:[%s216 + $0x11] sm:$0xff]
        %v662 = vld [vmem:[%s216 + $0x19] sm:$0x7f]
        %v663 = vld [vmem:[%s216 + $0x21] sm:$0xff]
        %v664 = vld [vmem:[%s216 + $0x29] sm:$0x7f]
        %v665 = vld [vmem:[%s216 + $0x31] sm:$0xff]
        %v666 = vld [vmem:[%s216 + $0x39] sm:$0x7f]
        %v667 = vld [vmem:[%s216 + $0x41] sm:$0xff]
        %v668 = vld [vmem:[%s216 + $0x49] sm:$0x7f]
        %v669 = vld [vmem:[%s216 + $0x51] sm:$0xff]
        %v670 = vld [vmem:[%s216 + $0x59] sm:$0x7f]
        %v671 = vld [vmem:[%s216 + $0x61] sm:$0xff]
        %v672 = vld [vmem:[%s216 + $0x69] sm:$0x7f]
        %v673 = vld [vmem:[%s216 + $0x71] sm:$0xff]
        %v674 = vld [vmem:[%s216 + $0x79] sm:$0x7f]
        %v675 = vld [vmem:[%s216 + $0x81] sm:$0xff]
        %v676 = vld [vmem:[%s216 + $0x89] sm:$0x7f]
        %v677 = vld [vmem:[%s216 + $0x91] sm:$0xff]
        %v678 = vld [vmem:[%s216 + $0x99] sm:$0x7f]
        %v679 = vld [vmem:[%s216 + $0xa1] sm:$0xff]
        %v680 = vld [vmem:[%s216 + $0xa9] sm:$0x7f]
        %v681 = vld [vmem:[%s216 + $0xb1] sm:$0xff]
        %v682 = vld [vmem:[%s216 + $0xb9] sm:$0x7f]
        %v683 = vld [vmem:[%s216 + $0xc1] sm:$0xff]
        %v684 = vld [vmem:[%s216 + $0xc9] sm:$0x7f]
        %v685 = vld [vmem:[%s216 + $0xd1] sm:$0xff]
        %v686 = vld [vmem:[%s216 + $0xd9] sm:$0x7f]
        %v687 = vld [vmem:[%s216 + $0xe1] sm:$0xff]
        %v688 = vld [vmem:[%s216 + $0xe9] sm:$0x7f]
        %v689 = vld [vmem:[%s380] sm:$0xff]
        %v690 = vld [vmem:[%s380 + $0x8] sm:$0x7f]
        %v691 = vld [vmem:[%s380 + $0x10] sm:$0xff]
        %v692 = vld [vmem:[%s380 + $0x18] sm:$0x7f]
        %v693 = vld [vmem:[%s380 + $0x20] sm:$0xff]
        %v694 = vld [vmem:[%s380 + $0x28] sm:$0x7f]
        %v695 = vld [vmem:[%s380 + $0x30] sm:$0xff]
        %v696 = vld [vmem:[%s380 + $0x38] sm:$0x7f]
        %v697 = vld [vmem:[%s380 + $0x40] sm:$0xff]
        %v698 = vld [vmem:[%s380 + $0x48] sm:$0x7f]
        %v699 = vld [vmem:[%s380 + $0x50] sm:$0xff]
        %v700 = vld [vmem:[%s380 + $0x58] sm:$0x7f]
        %v701 = vld [vmem:[%s380 + $0x60] sm:$0xff]
        %v702 = vld [vmem:[%s380 + $0x68] sm:$0x7f]
        %v703 = vld [vmem:[%s380 + $0x70] sm:$0xff]
        %v704 = vld [vmem:[%s380 + $0x78] sm:$0x7f]
        %v705 = vld [vmem:[%s380 + $0x80] sm:$0xff]
        %v706 = vld [vmem:[%s380 + $0x88] sm:$0x7f]
        %v707 = vld [vmem:[%s380 + $0x90] sm:$0xff]
        %v708 = vld [vmem:[%s380 + $0x98] sm:$0x7f]
        %v709 = vld [vmem:[%s380 + $0xa0] sm:$0xff]
        %v710 = vld [vmem:[%s380 + $0xa8] sm:$0x7f]
        %v711 = vld [vmem:[%s380 + $0xb0] sm:$0xff]
        %v712 = vld [vmem:[%s380 + $0xb8] sm:$0x7f]
        %v713 = vld [vmem:[%s380 + $0xc0] sm:$0xff]
        %v714 = vld [vmem:[%s380 + $0xc8] sm:$0x7f]
        %v715 = vld [vmem:[%s380 + $0xd0] sm:$0xff]
        %v716 = vld [vmem:[%s380 + $0xd8] sm:$0x7f]
        %v717 = vld [vmem:[%s380 + $0xe0] sm:$0xff]
        %v718 = vld [vmem:[%s380 + $0xe8] sm:$0x7f]
        %v719 = vlaneseq
        %v720 = vshrl.u32 %v719, 7
        %v721 = vsub.s32 2, %v720
        %v722 = vrot.slane %v247, %v721
        %v723 = vmul.f32 %v659, %v722
        %v724 = vmul.f32 %v660, %v722
        %v725 = vmul.f32 %v661, %v722
        %v726 = vmul.f32 %v662, %v722
        %v727 = vmul.f32 %v663, %v722
        %v728 = vmul.f32 %v664, %v722
        %v729 = vmul.f32 %v665, %v722
        %v730 = vmul.f32 %v666, %v722
        %v731 = vmul.f32 %v667, %v722
        %v732 = vmul.f32 %v668, %v722
        %v733 = vmul.f32 %v669, %v722
        %v734 = vmul.f32 %v670, %v722
        %v735 = vmul.f32 %v671, %v722
        %v736 = vmul.f32 %v672, %v722
        %v737 = vmul.f32 %v673, %v722
        %v738 = vmul.f32 %v674, %v722
        %v739 = vmul.f32 %v675, %v722
        %v740 = vmul.f32 %v676, %v722
        %v741 = vmul.f32 %v677, %v722
        %v742 = vmul.f32 %v678, %v722
        %v743 = vmul.f32 %v679, %v722
        %v744 = vmul.f32 %v680, %v722
        %v745 = vmul.f32 %v681, %v722
        %v746 = vmul.f32 %v682, %v722
        %v747 = vmul.f32 %v683, %v722
        %v748 = vmul.f32 %v684, %v722
        %v749 = vmul.f32 %v685, %v722
        %v750 = vmul.f32 %v686, %v722
        %v751 = vmul.f32 %v687, %v722
        %v752 = vmul.f32 %v688, %v722
        %v753 = vadd.f32 %v689, %v723
        %v754 = vadd.f32 %v690, %v724
        %v755 = vadd.f32 %v691, %v725
        %v756 = vadd.f32 %v692, %v726
        %v757 = vadd.f32 %v693, %v727
        %v758 = vadd.f32 %v694, %v728
        %v759 = vadd.f32 %v695, %v729
        %v760 = vadd.f32 %v696, %v730
        %v761 = vadd.f32 %v697, %v731
        %v762 = vadd.f32 %v698, %v732
        %v763 = vadd.f32 %v699, %v733
        %v764 = vadd.f32 %v700, %v734
        %v765 = vadd.f32 %v701, %v735
        %v766 = vadd.f32 %v702, %v736
        %v767 = vadd.f32 %v703, %v737
        %v768 = vadd.f32 %v704, %v738
        %v769 = vadd.f32 %v705, %v739
        %v770 = vadd.f32 %v706, %v740
        %v771 = vadd.f32 %v707, %v741
        %v772 = vadd.f32 %v708, %v742
        %v773 = vadd.f32 %v709, %v743
        %v774 = vadd.f32 %v710, %v744
        %v775 = vadd.f32 %v711, %v745
        %v776 = vadd.f32 %v712, %v746
        %v777 = vadd.f32 %v713, %v747
        %v778 = vadd.f32 %v714, %v748
        %v779 = vadd.f32 %v715, %v749
        %v780 = vadd.f32 %v716, %v750
        %v781 = vadd.f32 %v717, %v751
        %v782 = vadd.f32 %v718, %v752
        %783 = vst [vmem:[%s380] sm:$0xff] %v753
        %784 = vst [vmem:[%s380 + $0x8] sm:$0x7f] %v754
        %785 = vst [vmem:[%s380 + $0x10] sm:$0xff] %v755
        %786 = vst [vmem:[%s380 + $0x18] sm:$0x7f] %v756
        %787 = vst [vmem:[%s380 + $0x20] sm:$0xff] %v757
        %788 = vst [vmem:[%s380 + $0x28] sm:$0x7f] %v758
        %789 = vst [vmem:[%s380 + $0x30] sm:$0xff] %v759
        %790 = vst [vmem:[%s380 + $0x38] sm:$0x7f] %v760
        %791 = vst [vmem:[%s380 + $0x40] sm:$0xff] %v761
        %792 = vst [vmem:[%s380 + $0x48] sm:$0x7f] %v762
        %793 = vst [vmem:[%s380 + $0x50] sm:$0xff] %v763
        %794 = vst [vmem:[%s380 + $0x58] sm:$0x7f] %v764
        %795 = vst [vmem:[%s380 + $0x60] sm:$0xff] %v765
        %796 = vst [vmem:[%s380 + $0x68] sm:$0x7f] %v766
        %797 = vst [vmem:[%s380 + $0x70] sm:$0xff] %v767
        %798 = vst [vmem:[%s380 + $0x78] sm:$0x7f] %v768
        %799 = vst [vmem:[%s380 + $0x80] sm:$0xff] %v769
        %800 = vst [vmem:[%s380 + $0x88] sm:$0x7f] %v770
        %801 = vst [vmem:[%s380 + $0x90] sm:$0xff] %v771
        %802 = vst [vmem:[%s380 + $0x98] sm:$0x7f] %v772
        %803 = vst [vmem:[%s380 + $0xa0] sm:$0xff] %v773
        %804 = vst [vmem:[%s380 + $0xa8] sm:$0x7f] %v774
        %805 = vst [vmem:[%s380 + $0xb0] sm:$0xff] %v775
        %806 = vst [vmem:[%s380 + $0xb8] sm:$0x7f] %v776
        %807 = vst [vmem:[%s380 + $0xc0] sm:$0xff] %v777
        %808 = vst [vmem:[%s380 + $0xc8] sm:$0x7f] %v778
        %809 = vst [vmem:[%s380 + $0xd0] sm:$0xff] %v779
        %810 = vst [vmem:[%s380 + $0xd8] sm:$0x7f] %v780
        %811 = vst [vmem:[%s380 + $0xe0] sm:$0xff] %v781
        %812 = vst [vmem:[%s380 + $0xe8] sm:$0x7f] %v782
        %v813 = vld [vmem:[%s216] sm:$0xff]
        %v814 = vld [vmem:[%s216 + $0x8] sm:$0x7f]
        %v815 = vld [vmem:[%s216 + $0x10] sm:$0xff]
        %v816 = vld [vmem:[%s216 + $0x18] sm:$0x7f]
        %v817 = vld [vmem:[%s216 + $0x20] sm:$0xff]
        %v818 = vld [vmem:[%s216 + $0x28] sm:$0x7f]
        %v819 = vld [vmem:[%s216 + $0x30] sm:$0xff]
        %v820 = vld [vmem:[%s216 + $0x38] sm:$0x7f]
        %v821 = vld [vmem:[%s216 + $0x40] sm:$0xff]
        %v822 = vld [vmem:[%s216 + $0x48] sm:$0x7f]
        %v823 = vld [vmem:[%s216 + $0x50] sm:$0xff]
        %v824 = vld [vmem:[%s216 + $0x58] sm:$0x7f]
        %v825 = vld [vmem:[%s216 + $0x60] sm:$0xff]
        %v826 = vld [vmem:[%s216 + $0x68] sm:$0x7f]
        %v827 = vld [vmem:[%s216 + $0x70] sm:$0xff]
        %v828 = vld [vmem:[%s216 + $0x78] sm:$0x7f]
        %v829 = vld [vmem:[%s216 + $0x80] sm:$0xff]
        %v830 = vld [vmem:[%s216 + $0x88] sm:$0x7f]
        %v831 = vld [vmem:[%s216 + $0x90] sm:$0xff]
        %v832 = vld [vmem:[%s216 + $0x98] sm:$0x7f]
        %v833 = vld [vmem:[%s216 + $0xa0] sm:$0xff]
        %v834 = vld [vmem:[%s216 + $0xa8] sm:$0x7f]
        %v835 = vld [vmem:[%s216 + $0xb0] sm:$0xff]
        %v836 = vld [vmem:[%s216 + $0xb8] sm:$0x7f]
        %v837 = vld [vmem:[%s216 + $0xc0] sm:$0xff]
        %v838 = vld [vmem:[%s216 + $0xc8] sm:$0x7f]
        %v839 = vld [vmem:[%s216 + $0xd0] sm:$0xff]
        %v840 = vld [vmem:[%s216 + $0xd8] sm:$0x7f]
        %v841 = vld [vmem:[%s216 + $0xe0] sm:$0xff]
        %v842 = vld [vmem:[%s216 + $0xe8] sm:$0x7f]
        %v843 = vld [vmem:[%s216 + $0xf0] sm:$0xff]
        %v844 = vld [vmem:[%s216 + $0xf8] sm:$0x7f]
        %v845 = vld [vmem:[#allocation2 + $0x1] sm:$0xff]
        %v846 = vld [vmem:[#allocation2 + $0x9] sm:$0x7f]
        %v847 = vld [vmem:[#allocation2 + $0x11] sm:$0xff]
        %v848 = vld [vmem:[#allocation2 + $0x19] sm:$0x7f]
        %v849 = vld [vmem:[#allocation2 + $0x21] sm:$0xff]
        %v850 = vld [vmem:[#allocation2 + $0x29] sm:$0x7f]
        %v851 = vld [vmem:[#allocation2 + $0x31] sm:$0xff]
        %v852 = vld [vmem:[#allocation2 + $0x39] sm:$0x7f]
        %v853 = vld [vmem:[#allocation2 + $0x41] sm:$0xff]
        %v854 = vld [vmem:[#allocation2 + $0x49] sm:$0x7f]
        %v855 = vld [vmem:[#allocation2 + $0x51] sm:$0xff]
        %v856 = vld [vmem:[#allocation2 + $0x59] sm:$0x7f]
        %v857 = vld [vmem:[#allocation2 + $0x61] sm:$0xff]
        %v858 = vld [vmem:[#allocation2 + $0x69] sm:$0x7f]
        %v859 = vld [vmem:[#allocation2 + $0x71] sm:$0xff]
        %v860 = vld [vmem:[#allocation2 + $0x79] sm:$0x7f]
        %v861 = vld [vmem:[#allocation2 + $0x81] sm:$0xff]
        %v862 = vld [vmem:[#allocation2 + $0x89] sm:$0x7f]
        %v863 = vld [vmem:[#allocation2 + $0x91] sm:$0xff]
        %v864 = vld [vmem:[#allocation2 + $0x99] sm:$0x7f]
        %v865 = vld [vmem:[#allocation2 + $0xa1] sm:$0xff]
        %v866 = vld [vmem:[#allocation2 + $0xa9] sm:$0x7f]
        %v867 = vld [vmem:[#allocation2 + $0xb1] sm:$0xff]
        %v868 = vld [vmem:[#allocation2 + $0xb9] sm:$0x7f]
        %v869 = vld [vmem:[#allocation2 + $0xc1] sm:$0xff]
        %v870 = vld [vmem:[#allocation2 + $0xc9] sm:$0x7f]
        %v871 = vld [vmem:[#allocation2 + $0xd1] sm:$0xff]
        %v872 = vld [vmem:[#allocation2 + $0xd9] sm:$0x7f]
        %v873 = vld [vmem:[#allocation2 + $0xe1] sm:$0xff]
        %v874 = vld [vmem:[#allocation2 + $0xe9] sm:$0x7f]
        %v875 = vld [vmem:[#allocation2 + $0xf1] sm:$0xff]
        %v876 = vld [vmem:[#allocation2 + $0xf9] sm:$0x7f]
        %v877 = vlaneseq
        %v878 = vshrl.u32 %v877, 7
        %v879 = vsub.s32 3, %v878
        %v880 = vrot.slane %v247, %v879
        %v881 = vmul.f32 %v813, %v880
        %v882 = vmul.f32 %v814, %v880
        %v883 = vmul.f32 %v815, %v880
        %v884 = vmul.f32 %v816, %v880
        %v885 = vmul.f32 %v817, %v880
        %v886 = vmul.f32 %v818, %v880
        %v887 = vmul.f32 %v819, %v880
        %v888 = vmul.f32 %v820, %v880
        %v889 = vmul.f32 %v821, %v880
        %v890 = vmul.f32 %v822, %v880
        %v891 = vmul.f32 %v823, %v880
        %v892 = vmul.f32 %v824, %v880
        %v893 = vmul.f32 %v825, %v880
        %v894 = vmul.f32 %v826, %v880
        %v895 = vmul.f32 %v827, %v880
        %v896 = vmul.f32 %v828, %v880
        %v897 = vmul.f32 %v829, %v880
        %v898 = vmul.f32 %v830, %v880
        %v899 = vmul.f32 %v831, %v880
        %v900 = vmul.f32 %v832, %v880
        %v901 = vmul.f32 %v833, %v880
        %v902 = vmul.f32 %v834, %v880
        %v903 = vmul.f32 %v835, %v880
        %v904 = vmul.f32 %v836, %v880
        %v905 = vmul.f32 %v837, %v880
        %v906 = vmul.f32 %v838, %v880
        %v907 = vmul.f32 %v839, %v880
        %v908 = vmul.f32 %v840, %v880
        %v909 = vmul.f32 %v841, %v880
        %v910 = vmul.f32 %v842, %v880
        %v911 = vmul.f32 %v843, %v880
        %v912 = vmul.f32 %v844, %v880
        %v913 = vadd.f32 %v845, %v881
        %v914 = vadd.f32 %v846, %v882
        %v915 = vadd.f32 %v847, %v883
        %v916 = vadd.f32 %v848, %v884
        %v917 = vadd.f32 %v849, %v885
        %v918 = vadd.f32 %v850, %v886
        %v919 = vadd.f32 %v851, %v887
        %v920 = vadd.f32 %v852, %v888
        %v921 = vadd.f32 %v853, %v889
        %v922 = vadd.f32 %v854, %v890
        %v923 = vadd.f32 %v855, %v891
        %v924 = vadd.f32 %v856, %v892
        %v925 = vadd.f32 %v857, %v893
        %v926 = vadd.f32 %v858, %v894
        %v927 = vadd.f32 %v859, %v895
        %v928 = vadd.f32 %v860, %v896
        %v929 = vadd.f32 %v861, %v897
        %v930 = vadd.f32 %v862, %v898
        %v931 = vadd.f32 %v863, %v899
        %v932 = vadd.f32 %v864, %v900
        %v933 = vadd.f32 %v865, %v901
        %v934 = vadd.f32 %v866, %v902
        %v935 = vadd.f32 %v867, %v903
        %v936 = vadd.f32 %v868, %v904
        %v937 = vadd.f32 %v869, %v905
        %v938 = vadd.f32 %v870, %v906
        %v939 = vadd.f32 %v871, %v907
        %v940 = vadd.f32 %v872, %v908
        %v941 = vadd.f32 %v873, %v909
        %v942 = vadd.f32 %v874, %v910
        %v943 = vadd.f32 %v875, %v911
        %v944 = vadd.f32 %v876, %v912
        %945 = vst [vmem:[#allocation2 + $0x1] sm:$0xff] %v913
        %946 = vst [vmem:[#allocation2 + $0x9] sm:$0x7f] %v914
        %947 = vst [vmem:[#allocation2 + $0x11] sm:$0xff] %v915
        %948 = vst [vmem:[#allocation2 + $0x19] sm:$0x7f] %v916
        %949 = vst [vmem:[#allocation2 + $0x21] sm:$0xff] %v917
        %950 = vst [vmem:[#allocation2 + $0x29] sm:$0x7f] %v918
        %951 = vst [vmem:[#allocation2 + $0x31] sm:$0xff] %v919
        %952 = vst [vmem:[#allocation2 + $0x39] sm:$0x7f] %v920
        %953 = vst [vmem:[#allocation2 + $0x41] sm:$0xff] %v921
        %954 = vst [vmem:[#allocation2 + $0x49] sm:$0x7f] %v922
        %955 = vst [vmem:[#allocation2 + $0x51] sm:$0xff] %v923
        %956 = vst [vmem:[#allocation2 + $0x59] sm:$0x7f] %v924
        %957 = vst [vmem:[#allocation2 + $0x61] sm:$0xff] %v925
        %958 = vst [vmem:[#allocation2 + $0x69] sm:$0x7f] %v926
        %959 = vst [vmem:[#allocation2 + $0x71] sm:$0xff] %v927
        %960 = vst [vmem:[#allocation2 + $0x79] sm:$0x7f] %v928
        %961 = vst [vmem:[#allocation2 + $0x81] sm:$0xff] %v929
        %962 = vst [vmem:[#allocation2 + $0x89] sm:$0x7f] %v930
        %963 = vst [vmem:[#allocation2 + $0x91] sm:$0xff] %v931
        %964 = vst [vmem:[#allocation2 + $0x99] sm:$0x7f] %v932
        %965 = vst [vmem:[#allocation2 + $0xa1] sm:$0xff] %v933
        %966 = vst [vmem:[#allocation2 + $0xa9] sm:$0x7f] %v934
        %967 = vst [vmem:[#allocation2 + $0xb1] sm:$0xff] %v935
        %968 = vst [vmem:[#allocation2 + $0xb9] sm:$0x7f] %v936
        %969 = vst [vmem:[#allocation2 + $0xc1] sm:$0xff] %v937
        %970 = vst [vmem:[#allocation2 + $0xc9] sm:$0x7f] %v938
        %971 = vst [vmem:[#allocation2 + $0xd1] sm:$0xff] %v939
        %972 = vst [vmem:[#allocation2 + $0xd9] sm:$0x7f] %v940
        %973 = vst [vmem:[#allocation2 + $0xe1] sm:$0xff] %v941
        %974 = vst [vmem:[#allocation2 + $0xe9] sm:$0x7f] %v942
        %975 = vst [vmem:[#allocation2 + $0xf1] sm:$0xff] %v943
        %976 = vst [vmem:[#allocation2 + $0xf9] sm:$0x7f] %v944
        %v977 = vld [vmem:[%s216 + $0x1] sm:$0xff]
        %v978 = vld [vmem:[%s216 + $0x9] sm:$0x7f]
        %v979 = vld [vmem:[%s216 + $0x11] sm:$0xff]
        %v980 = vld [vmem:[%s216 + $0x19] sm:$0x7f]
        %v981 = vld [vmem:[%s216 + $0x21] sm:$0xff]
        %v982 = vld [vmem:[%s216 + $0x29] sm:$0x7f]
        %v983 = vld [vmem:[%s216 + $0x31] sm:$0xff]
        %v984 = vld [vmem:[%s216 + $0x39] sm:$0x7f]
        %v985 = vld [vmem:[%s216 + $0x41] sm:$0xff]
        %v986 = vld [vmem:[%s216 + $0x49] sm:$0x7f]
        %v987 = vld [vmem:[%s216 + $0x51] sm:$0xff]
        %v988 = vld [vmem:[%s216 + $0x59] sm:$0x7f]
        %v989 = vld [vmem:[%s216 + $0x61] sm:$0xff]
        %v990 = vld [vmem:[%s216 + $0x69] sm:$0x7f]
        %v991 = vld [vmem:[%s216 + $0x71] sm:$0xff]
        %v992 = vld [vmem:[%s216 + $0x79] sm:$0x7f]
        %v993 = vld [vmem:[%s216 + $0x81] sm:$0xff]
        %v994 = vld [vmem:[%s216 + $0x89] sm:$0x7f]
        %v995 = vld [vmem:[%s216 + $0x91] sm:$0xff]
        %v996 = vld [vmem:[%s216 + $0x99] sm:$0x7f]
        %v997 = vld [vmem:[%s216 + $0xa1] sm:$0xff]
        %v998 = vld [vmem:[%s216 + $0xa9] sm:$0x7f]
        %v999 = vld [vmem:[%s216 + $0xb1] sm:$0xff]
        %v1000 = vld [vmem:[%s216 + $0xb9] sm:$0x7f]
        %v1001 = vld [vmem:[%s216 + $0xc1] sm:$0xff]
        %v1002 = vld [vmem:[%s216 + $0xc9] sm:$0x7f]
        %v1003 = vld [vmem:[%s216 + $0xd1] sm:$0xff]
        %v1004 = vld [vmem:[%s216 + $0xd9] sm:$0x7f]
        %v1005 = vld [vmem:[%s216 + $0xe1] sm:$0xff]
        %v1006 = vld [vmem:[%s216 + $0xe9] sm:$0x7f]
        %v1007 = vld [vmem:[%s216 + $0xf1] sm:$0xff]
        %v1008 = vld [vmem:[%s216 + $0xf9] sm:$0x7f]
        %v1009 = vld [vmem:[#allocation2] sm:$0xff]
        %v1010 = vld [vmem:[#allocation2 + $0x8] sm:$0x7f]
        %v1011 = vld [vmem:[#allocation2 + $0x10] sm:$0xff]
        %v1012 = vld [vmem:[#allocation2 + $0x18] sm:$0x7f]
        %v1013 = vld [vmem:[#allocation2 + $0x20] sm:$0xff]
        %v1014 = vld [vmem:[#allocation2 + $0x28] sm:$0x7f]
        %v1015 = vld [vmem:[#allocation2 + $0x30] sm:$0xff]
        %v1016 = vld [vmem:[#allocation2 + $0x38] sm:$0x7f]
        %v1017 = vld [vmem:[#allocation2 + $0x40] sm:$0xff]
        %v1018 = vld [vmem:[#allocation2 + $0x48] sm:$0x7f]
        %v1019 = vld [vmem:[#allocation2 + $0x50] sm:$0xff]
        %v1020 = vld [vmem:[#allocation2 + $0x58] sm:$0x7f]
        %v1021 = vld [vmem:[#allocation2 + $0x60] sm:$0xff]
        %v1022 = vld [vmem:[#allocation2 + $0x68] sm:$0x7f]
        %v1023 = vld [vmem:[#allocation2 + $0x70] sm:$0xff]
        %v1024 = vld [vmem:[#allocation2 + $0x78] sm:$0x7f]
        %v1025 = vld [vmem:[#allocation2 + $0x80] sm:$0xff]
        %v1026 = vld [vmem:[#allocation2 + $0x88] sm:$0x7f]
        %v1027 = vld [vmem:[#allocation2 + $0x90] sm:$0xff]
        %v1028 = vld [vmem:[#allocation2 + $0x98] sm:$0x7f]
        %v1029 = vld [vmem:[#allocation2 + $0xa0] sm:$0xff]
        %v1030 = vld [vmem:[#allocation2 + $0xa8] sm:$0x7f]
        %v1031 = vld [vmem:[#allocation2 + $0xb0] sm:$0xff]
        %v1032 = vld [vmem:[#allocation2 + $0xb8] sm:$0x7f]
        %v1033 = vld [vmem:[#allocation2 + $0xc0] sm:$0xff]
        %v1034 = vld [vmem:[#allocation2 + $0xc8] sm:$0x7f]
        %v1035 = vld [vmem:[#allocation2 + $0xd0] sm:$0xff]
        %v1036 = vld [vmem:[#allocation2 + $0xd8] sm:$0x7f]
        %v1037 = vld [vmem:[#allocation2 + $0xe0] sm:$0xff]
        %v1038 = vld [vmem:[#allocation2 + $0xe8] sm:$0x7f]
        %v1039 = vld [vmem:[#allocation2 + $0xf0] sm:$0xff]
        %v1040 = vld [vmem:[#allocation2 + $0xf8] sm:$0x7f]
        %v1041 = vlaneseq
        %v1042 = vshrl.u32 %v1041, 7
        %v1043 = vsub.s32 5, %v1042
        %v1044 = vrot.slane %v247, %v1043
        %v1045 = vmul.f32 %v977, %v1044
        %v1046 = vmul.f32 %v978, %v1044
        %v1047 = vmul.f32 %v979, %v1044
        %v1048 = vmul.f32 %v980, %v1044
        %v1049 = vmul.f32 %v981, %v1044
        %v1050 = vmul.f32 %v982, %v1044
        %v1051 = vmul.f32 %v983, %v1044
        %v1052 = vmul.f32 %v984, %v1044
        %v1053 = vmul.f32 %v985, %v1044
        %v1054 = vmul.f32 %v986, %v1044
        %v1055 = vmul.f32 %v987, %v1044
        %v1056 = vmul.f32 %v988, %v1044
        %v1057 = vmul.f32 %v989, %v1044
        %v1058 = vmul.f32 %v990, %v1044
        %v1059 = vmul.f32 %v991, %v1044
        %v1060 = vmul.f32 %v992, %v1044
        %v1061 = vmul.f32 %v993, %v1044
        %v1062 = vmul.f32 %v994, %v1044
        %v1063 = vmul.f32 %v995, %v1044
        %v1064 = vmul.f32 %v996, %v1044
        %v1065 = vmul.f32 %v997, %v1044
        %v1066 = vmul.f32 %v998, %v1044
        %v1067 = vmul.f32 %v999, %v1044
        %v1068 = vmul.f32 %v1000, %v1044
        %v1069 = vmul.f32 %v1001, %v1044
        %v1070 = vmul.f32 %v1002, %v1044
        %v1071 = vmul.f32 %v1003, %v1044
        %v1072 = vmul.f32 %v1004, %v1044
        %v1073 = vmul.f32 %v1005, %v1044
        %v1074 = vmul.f32 %v1006, %v1044
        %v1075 = vmul.f32 %v1007, %v1044
        %v1076 = vmul.f32 %v1008, %v1044
        %v1077 = vadd.f32 %v1009, %v1045
        %v1078 = vadd.f32 %v1010, %v1046
        %v1079 = vadd.f32 %v1011, %v1047
        %v1080 = vadd.f32 %v1012, %v1048
        %v1081 = vadd.f32 %v1013, %v1049
        %v1082 = vadd.f32 %v1014, %v1050
        %v1083 = vadd.f32 %v1015, %v1051
        %v1084 = vadd.f32 %v1016, %v1052
        %v1085 = vadd.f32 %v1017, %v1053
        %v1086 = vadd.f32 %v1018, %v1054
        %v1087 = vadd.f32 %v1019, %v1055
        %v1088 = vadd.f32 %v1020, %v1056
        %v1089 = vadd.f32 %v1021, %v1057
        %v1090 = vadd.f32 %v1022, %v1058
        %v1091 = vadd.f32 %v1023, %v1059
        %v1092 = vadd.f32 %v1024, %v1060
        %v1093 = vadd.f32 %v1025, %v1061
        %v1094 = vadd.f32 %v1026, %v1062
        %v1095 = vadd.f32 %v1027, %v1063
        %v1096 = vadd.f32 %v1028, %v1064
        %v1097 = vadd.f32 %v1029, %v1065
        %v1098 = vadd.f32 %v1030, %v1066
        %v1099 = vadd.f32 %v1031, %v1067
        %v1100 = vadd.f32 %v1032, %v1068
        %v1101 = vadd.f32 %v1033, %v1069
        %v1102 = vadd.f32 %v1034, %v1070
        %v1103 = vadd.f32 %v1035, %v1071
        %v1104 = vadd.f32 %v1036, %v1072
        %v1105 = vadd.f32 %v1037, %v1073
        %v1106 = vadd.f32 %v1038, %v1074
        %v1107 = vadd.f32 %v1039, %v1075
        %v1108 = vadd.f32 %v1040, %v1076
        %1109 = vst [vmem:[#allocation2] sm:$0xff] %v1077
        %1110 = vst [vmem:[#allocation2 + $0x8] sm:$0x7f] %v1078
        %1111 = vst [vmem:[#allocation2 + $0x10] sm:$0xff] %v1079
        %1112 = vst [vmem:[#allocation2 + $0x18] sm:$0x7f] %v1080
        %1113 = vst [vmem:[#allocation2 + $0x20] sm:$0xff] %v1081
        %1114 = vst [vmem:[#allocation2 + $0x28] sm:$0x7f] %v1082
        %1115 = vst [vmem:[#allocation2 + $0x30] sm:$0xff] %v1083
        %1116 = vst [vmem:[#allocation2 + $0x38] sm:$0x7f] %v1084
        %1117 = vst [vmem:[#allocation2 + $0x40] sm:$0xff] %v1085
        %1118 = vst [vmem:[#allocation2 + $0x48] sm:$0x7f] %v1086
        %1119 = vst [vmem:[#allocation2 + $0x50] sm:$0xff] %v1087
        %1120 = vst [vmem:[#allocation2 + $0x58] sm:$0x7f] %v1088
        %1121 = vst [vmem:[#allocation2 + $0x60] sm:$0xff] %v1089
        %1122 = vst [vmem:[#allocation2 + $0x68] sm:$0x7f] %v1090
        %1123 = vst [vmem:[#allocation2 + $0x70] sm:$0xff] %v1091
        %1124 = vst [vmem:[#allocation2 + $0x78] sm:$0x7f] %v1092
        %1125 = vst [vmem:[#allocation2 + $0x80] sm:$0xff] %v1093
        %1126 = vst [vmem:[#allocation2 + $0x88] sm:$0x7f] %v1094
        %1127 = vst [vmem:[#allocation2 + $0x90] sm:$0xff] %v1095
        %1128 = vst [vmem:[#allocation2 + $0x98] sm:$0x7f] %v1096
        %1129 = vst [vmem:[#allocation2 + $0xa0] sm:$0xff] %v1097
        %1130 = vst [vmem:[#allocation2 + $0xa8] sm:$0x7f] %v1098
        %1131 = vst [vmem:[#allocation2 + $0xb0] sm:$0xff] %v1099
        %1132 = vst [vmem:[#allocation2 + $0xb8] sm:$0x7f] %v1100
        %1133 = vst [vmem:[#allocation2 + $0xc0] sm:$0xff] %v1101
        %1134 = vst [vmem:[#allocation2 + $0xc8] sm:$0x7f] %v1102
        %1135 = vst [vmem:[#allocation2 + $0xd0] sm:$0xff] %v1103
        %1136 = vst [vmem:[#allocation2 + $0xd8] sm:$0x7f] %v1104
        %1137 = vst [vmem:[#allocation2 + $0xe0] sm:$0xff] %v1105
        %1138 = vst [vmem:[#allocation2 + $0xe8] sm:$0x7f] %v1106
        %1139 = vst [vmem:[#allocation2 + $0xf0] sm:$0xff] %v1107
        %1140 = vst [vmem:[#allocation2 + $0xf8] sm:$0x7f] %v1108
        %s1141 = scalar_lea.vmem %s216, 16 [#allocation3]
        %v1142 = vld [vmem:[%s1141] sm:$0xff]
        %v1143 = vld [vmem:[%s1141 + $0x8] sm:$0x7f]
        %v1144 = vld [vmem:[%s1141 + $0x10] sm:$0xff]
        %v1145 = vld [vmem:[%s1141 + $0x18] sm:$0x7f]
        %v1146 = vld [vmem:[%s1141 + $0x20] sm:$0xff]
        %v1147 = vld [vmem:[%s1141 + $0x28] sm:$0x7f]
        %v1148 = vld [vmem:[%s1141 + $0x30] sm:$0xff]
        %v1149 = vld [vmem:[%s1141 + $0x38] sm:$0x7f]
        %v1150 = vld [vmem:[%s1141 + $0x40] sm:$0xff]
        %v1151 = vld [vmem:[%s1141 + $0x48] sm:$0x7f]
        %v1152 = vld [vmem:[%s1141 + $0x50] sm:$0xff]
        %v1153 = vld [vmem:[%s1141 + $0x58] sm:$0x7f]
        %v1154 = vld [vmem:[%s1141 + $0x60] sm:$0xff]
        %v1155 = vld [vmem:[%s1141 + $0x68] sm:$0x7f]
        %v1156 = vld [vmem:[%s1141 + $0x70] sm:$0xff]
        %v1157 = vld [vmem:[%s1141 + $0x78] sm:$0x7f]
        %v1158 = vld [vmem:[%s1141 + $0x80] sm:$0xff]
        %v1159 = vld [vmem:[%s1141 + $0x88] sm:$0x7f]
        %v1160 = vld [vmem:[%s1141 + $0x90] sm:$0xff]
        %v1161 = vld [vmem:[%s1141 + $0x98] sm:$0x7f]
        %v1162 = vld [vmem:[%s1141 + $0xa0] sm:$0xff]
        %v1163 = vld [vmem:[%s1141 + $0xa8] sm:$0x7f]
        %v1164 = vld [vmem:[%s1141 + $0xb0] sm:$0xff]
        %v1165 = vld [vmem:[%s1141 + $0xb8] sm:$0x7f]
        %v1166 = vld [vmem:[%s1141 + $0xc0] sm:$0xff]
        %v1167 = vld [vmem:[%s1141 + $0xc8] sm:$0x7f]
        %v1168 = vld [vmem:[%s1141 + $0xd0] sm:$0xff]
        %v1169 = vld [vmem:[%s1141 + $0xd8] sm:$0x7f]
        %v1170 = vld [vmem:[%s1141 + $0xe0] sm:$0xff]
        %v1171 = vld [vmem:[%s1141 + $0xe8] sm:$0x7f]
        %v1172 = vld [vmem:[#allocation2 + $0x1] sm:$0xff]
        %v1173 = vld [vmem:[#allocation2 + $0x9] sm:$0x7f]
        %v1174 = vld [vmem:[#allocation2 + $0x11] sm:$0xff]
        %v1175 = vld [vmem:[#allocation2 + $0x19] sm:$0x7f]
        %v1176 = vld [vmem:[#allocation2 + $0x21] sm:$0xff]
        %v1177 = vld [vmem:[#allocation2 + $0x29] sm:$0x7f]
        %v1178 = vld [vmem:[#allocation2 + $0x31] sm:$0xff]
        %v1179 = vld [vmem:[#allocation2 + $0x39] sm:$0x7f]
        %v1180 = vld [vmem:[#allocation2 + $0x41] sm:$0xff]
        %v1181 = vld [vmem:[#allocation2 + $0x49] sm:$0x7f]
        %v1182 = vld [vmem:[#allocation2 + $0x51] sm:$0xff]
        %v1183 = vld [vmem:[#allocation2 + $0x59] sm:$0x7f]
        %v1184 = vld [vmem:[#allocation2 + $0x61] sm:$0xff]
        %v1185 = vld [vmem:[#allocation2 + $0x69] sm:$0x7f]
        %v1186 = vld [vmem:[#allocation2 + $0x71] sm:$0xff]
        %v1187 = vld [vmem:[#allocation2 + $0x79] sm:$0x7f]
        %v1188 = vld [vmem:[#allocation2 + $0x81] sm:$0xff]
        %v1189 = vld [vmem:[#allocation2 + $0x89] sm:$0x7f]
        %v1190 = vld [vmem:[#allocation2 + $0x91] sm:$0xff]
        %v1191 = vld [vmem:[#allocation2 + $0x99] sm:$0x7f]
        %v1192 = vld [vmem:[#allocation2 + $0xa1] sm:$0xff]
        %v1193 = vld [vmem:[#allocation2 + $0xa9] sm:$0x7f]
        %v1194 = vld [vmem:[#allocation2 + $0xb1] sm:$0xff]
        %v1195 = vld [vmem:[#allocation2 + $0xb9] sm:$0x7f]
        %v1196 = vld [vmem:[#allocation2 + $0xc1] sm:$0xff]
        %v1197 = vld [vmem:[#allocation2 + $0xc9] sm:$0x7f]
        %v1198 = vld [vmem:[#allocation2 + $0xd1] sm:$0xff]
        %v1199 = vld [vmem:[#allocation2 + $0xd9] sm:$0x7f]
        %v1200 = vld [vmem:[#allocation2 + $0xe1] sm:$0xff]
        %v1201 = vld [vmem:[#allocation2 + $0xe9] sm:$0x7f]
        %v1202 = vlaneseq
        %v1203 = vshrl.u32 %v1202, 7
        %v1204 = vsub.s32 6, %v1203
        %v1205 = vrot.slane %v247, %v1204
        %v1206 = vmul.f32 %v1142, %v1205
        %v1207 = vmul.f32 %v1143, %v1205
        %v1208 = vmul.f32 %v1144, %v1205
        %v1209 = vmul.f32 %v1145, %v1205
        %v1210 = vmul.f32 %v1146, %v1205
        %v1211 = vmul.f32 %v1147, %v1205
        %v1212 = vmul.f32 %v1148, %v1205
        %v1213 = vmul.f32 %v1149, %v1205
        %v1214 = vmul.f32 %v1150, %v1205
        %v1215 = vmul.f32 %v1151, %v1205
        %v1216 = vmul.f32 %v1152, %v1205
        %v1217 = vmul.f32 %v1153, %v1205
        %v1218 = vmul.f32 %v1154, %v1205
        %v1219 = vmul.f32 %v1155, %v1205
        %v1220 = vmul.f32 %v1156, %v1205
        %v1221 = vmul.f32 %v1157, %v1205
        %v1222 = vmul.f32 %v1158, %v1205
        %v1223 = vmul.f32 %v1159, %v1205
        %v1224 = vmul.f32 %v1160, %v1205
        %v1225 = vmul.f32 %v1161, %v1205
        %v1226 = vmul.f32 %v1162, %v1205
        %v1227 = vmul.f32 %v1163, %v1205
        %v1228 = vmul.f32 %v1164, %v1205
        %v1229 = vmul.f32 %v1165, %v1205
        %v1230 = vmul.f32 %v1166, %v1205
        %v1231 = vmul.f32 %v1167, %v1205
        %v1232 = vmul.f32 %v1168, %v1205
        %v1233 = vmul.f32 %v1169, %v1205
        %v1234 = vmul.f32 %v1170, %v1205
        %v1235 = vmul.f32 %v1171, %v1205
        %v1236 = vadd.f32 %v1172, %v1206
        %v1237 = vadd.f32 %v1173, %v1207
        %v1238 = vadd.f32 %v1174, %v1208
        %v1239 = vadd.f32 %v1175, %v1209
        %v1240 = vadd.f32 %v1176, %v1210
        %v1241 = vadd.f32 %v1177, %v1211
        %v1242 = vadd.f32 %v1178, %v1212
        %v1243 = vadd.f32 %v1179, %v1213
        %v1244 = vadd.f32 %v1180, %v1214
        %v1245 = vadd.f32 %v1181, %v1215
        %v1246 = vadd.f32 %v1182, %v1216
        %v1247 = vadd.f32 %v1183, %v1217
        %v1248 = vadd.f32 %v1184, %v1218
        %v1249 = vadd.f32 %v1185, %v1219
        %v1250 = vadd.f32 %v1186, %v1220
        %v1251 = vadd.f32 %v1187, %v1221
        %v1252 = vadd.f32 %v1188, %v1222
        %v1253 = vadd.f32 %v1189, %v1223
        %v1254 = vadd.f32 %v1190, %v1224
        %v1255 = vadd.f32 %v1191, %v1225
        %v1256 = vadd.f32 %v1192, %v1226
        %v1257 = vadd.f32 %v1193, %v1227
        %v1258 = vadd.f32 %v1194, %v1228
        %v1259 = vadd.f32 %v1195, %v1229
        %v1260 = vadd.f32 %v1196, %v1230
        %v1261 = vadd.f32 %v1197, %v1231
        %v1262 = vadd.f32 %v1198, %v1232
        %v1263 = vadd.f32 %v1199, %v1233
        %v1264 = vadd.f32 %v1200, %v1234
        %v1265 = vadd.f32 %v1201, %v1235
        %1266 = vst [vmem:[#allocation2 + $0x1] sm:$0xff] %v1236
        %1267 = vst [vmem:[#allocation2 + $0x9] sm:$0x7f] %v1237
        %1268 = vst [vmem:[#allocation2 + $0x11] sm:$0xff] %v1238
        %1269 = vst [vmem:[#allocation2 + $0x19] sm:$0x7f] %v1239
        %1270 = vst [vmem:[#allocation2 + $0x21] sm:$0xff] %v1240
        %1271 = vst [vmem:[#allocation2 + $0x29] sm:$0x7f] %v1241
        %1272 = vst [vmem:[#allocation2 + $0x31] sm:$0xff] %v1242
        %1273 = vst [vmem:[#allocation2 + $0x39] sm:$0x7f] %v1243
        %1274 = vst [vmem:[#allocation2 + $0x41] sm:$0xff] %v1244
        %1275 = vst [vmem:[#allocation2 + $0x49] sm:$0x7f] %v1245
        %1276 = vst [vmem:[#allocation2 + $0x51] sm:$0xff] %v1246
        %1277 = vst [vmem:[#allocation2 + $0x59] sm:$0x7f] %v1247
        %1278 = vst [vmem:[#allocation2 + $0x61] sm:$0xff] %v1248
        %1279 = vst [vmem:[#allocation2 + $0x69] sm:$0x7f] %v1249
        %1280 = vst [vmem:[#allocation2 + $0x71] sm:$0xff] %v1250
        %1281 = vst [vmem:[#allocation2 + $0x79] sm:$0x7f] %v1251
        %1282 = vst [vmem:[#allocation2 + $0x81] sm:$0xff] %v1252
        %1283 = vst [vmem:[#allocation2 + $0x89] sm:$0x7f] %v1253
        %1284 = vst [vmem:[#allocation2 + $0x91] sm:$0xff] %v1254
        %1285 = vst [vmem:[#allocation2 + $0x99] sm:$0x7f] %v1255
        %1286 = vst [vmem:[#allocation2 + $0xa1] sm:$0xff] %v1256
        %1287 = vst [vmem:[#allocation2 + $0xa9] sm:$0x7f] %v1257
        %1288 = vst [vmem:[#allocation2 + $0xb1] sm:$0xff] %v1258
        %1289 = vst [vmem:[#allocation2 + $0xb9] sm:$0x7f] %v1259
        %1290 = vst [vmem:[#allocation2 + $0xc1] sm:$0xff] %v1260
        %1291 = vst [vmem:[#allocation2 + $0xc9] sm:$0x7f] %v1261
        %1292 = vst [vmem:[#allocation2 + $0xd1] sm:$0xff] %v1262
        %1293 = vst [vmem:[#allocation2 + $0xd9] sm:$0x7f] %v1263
        %1294 = vst [vmem:[#allocation2 + $0xe1] sm:$0xff] %v1264
        %1295 = vst [vmem:[#allocation2 + $0xe9] sm:$0x7f] %v1265
        %v1296 = vld [vmem:[%s1141] sm:$0xff]
        %v1297 = vld [vmem:[%s1141 + $0x8] sm:$0xff]
        %v1298 = vld [vmem:[%s1141 + $0x10] sm:$0xff]
        %v1299 = vld [vmem:[%s1141 + $0x18] sm:$0xff]
        %v1300 = vld [vmem:[%s1141 + $0x20] sm:$0xff]
        %v1301 = vld [vmem:[%s1141 + $0x28] sm:$0xff]
        %v1302 = vld [vmem:[%s1141 + $0x30] sm:$0xff]
        %v1303 = vld [vmem:[%s1141 + $0x38] sm:$0xff]
        %v1304 = vld [vmem:[%s1141 + $0x40] sm:$0xff]
        %v1305 = vld [vmem:[%s1141 + $0x48] sm:$0xff]
        %v1306 = vld [vmem:[%s1141 + $0x50] sm:$0xff]
        %v1307 = vld [vmem:[%s1141 + $0x58] sm:$0xff]
        %v1308 = vld [vmem:[%s1141 + $0x60] sm:$0xff]
        %v1309 = vld [vmem:[%s1141 + $0x68] sm:$0xff]
        %v1310 = vld [vmem:[%s1141 + $0x70] sm:$0xff]
        %v1311 = vld [vmem:[%s1141 + $0x78] sm:$0xff]
        %v1312 = vld [vmem:[%s1141 + $0x80] sm:$0xff]
        %v1313 = vld [vmem:[%s1141 + $0x88] sm:$0xff]
        %v1314 = vld [vmem:[%s1141 + $0x90] sm:$0xff]
        %v1315 = vld [vmem:[%s1141 + $0x98] sm:$0xff]
        %v1316 = vld [vmem:[%s1141 + $0xa0] sm:$0xff]
        %v1317 = vld [vmem:[%s1141 + $0xa8] sm:$0xff]
        %v1318 = vld [vmem:[%s1141 + $0xb0] sm:$0xff]
        %v1319 = vld [vmem:[%s1141 + $0xb8] sm:$0xff]
        %v1320 = vld [vmem:[%s1141 + $0xc0] sm:$0xff]
        %v1321 = vld [vmem:[%s1141 + $0xc8] sm:$0xff]
        %v1322 = vld [vmem:[%s1141 + $0xd0] sm:$0xff]
        %v1323 = vld [vmem:[%s1141 + $0xd8] sm:$0xff]
        %v1324 = vld [vmem:[%s1141 + $0xe0] sm:$0xff]
        %v1325 = vld [vmem:[%s1141 + $0xe8] sm:$0xff]
        %v1326 = vld [vmem:[#allocation2] sm:$0xff]
        %v1327 = vld [vmem:[#allocation2 + $0x8] sm:$0xff]
        %v1328 = vld [vmem:[#allocation2 + $0x10] sm:$0xff]
        %v1329 = vld [vmem:[#allocation2 + $0x18] sm:$0xff]
        %v1330 = vld [vmem:[#allocation2 + $0x20] sm:$0xff]
        %v1331 = vld [vmem:[#allocation2 + $0x28] sm:$0xff]
        %v1332 = vld [vmem:[#allocation2 + $0x30] sm:$0xff]
        %v1333 = vld [vmem:[#allocation2 + $0x38] sm:$0xff]
        %v1334 = vld [vmem:[#allocation2 + $0x40] sm:$0xff]
        %v1335 = vld [vmem:[#allocation2 + $0x48] sm:$0xff]
        %v1336 = vld [vmem:[#allocation2 + $0x50] sm:$0xff]
        %v1337 = vld [vmem:[#allocation2 + $0x58] sm:$0xff]
        %v1338 = vld [vmem:[#allocation2 + $0x60] sm:$0xff]
        %v1339 = vld [vmem:[#allocation2 + $0x68] sm:$0xff]
        %v1340 = vld [vmem:[#allocation2 + $0x70] sm:$0xff]
        %v1341 = vld [vmem:[#allocation2 + $0x78] sm:$0xff]
        %v1342 = vld [vmem:[#allocation2 + $0x80] sm:$0xff]
        %v1343 = vld [vmem:[#allocation2 + $0x88] sm:$0xff]
        %v1344 = vld [vmem:[#allocation2 + $0x90] sm:$0xff]
        %v1345 = vld [vmem:[#allocation2 + $0x98] sm:$0xff]
        %v1346 = vld [vmem:[#allocation2 + $0xa0] sm:$0xff]
        %v1347 = vld [vmem:[#allocation2 + $0xa8] sm:$0xff]
        %v1348 = vld [vmem:[#allocation2 + $0xb0] sm:$0xff]
        %v1349 = vld [vmem:[#allocation2 + $0xb8] sm:$0xff]
        %v1350 = vld [vmem:[#allocation2 + $0xc0] sm:$0xff]
        %v1351 = vld [vmem:[#allocation2 + $0xc8] sm:$0xff]
        %v1352 = vld [vmem:[#allocation2 + $0xd0] sm:$0xff]
        %v1353 = vld [vmem:[#allocation2 + $0xd8] sm:$0xff]
        %v1354 = vld [vmem:[#allocation2 + $0xe0] sm:$0xff]
        %v1355 = vld [vmem:[#allocation2 + $0xe8] sm:$0xff]
        %v1356 = vlaneseq
        %v1357 = vshrl.u32 %v1356, 7
        %v1358 = vsub.s32 7, %v1357
        %v1359 = vrot.slane %v247, %v1358
        %v1360 = vmul.f32 %v1296, %v1359
        %v1361 = vmul.f32 %v1297, %v1359
        %v1362 = vmul.f32 %v1298, %v1359
        %v1363 = vmul.f32 %v1299, %v1359
        %v1364 = vmul.f32 %v1300, %v1359
        %v1365 = vmul.f32 %v1301, %v1359
        %v1366 = vmul.f32 %v1302, %v1359
        %v1367 = vmul.f32 %v1303, %v1359
        %v1368 = vmul.f32 %v1304, %v1359
        %v1369 = vmul.f32 %v1305, %v1359
        %v1370 = vmul.f32 %v1306, %v1359
        %v1371 = vmul.f32 %v1307, %v1359
        %v1372 = vmul.f32 %v1308, %v1359
        %v1373 = vmul.f32 %v1309, %v1359
        %v1374 = vmul.f32 %v1310, %v1359
        %v1375 = vmul.f32 %v1311, %v1359
        %v1376 = vmul.f32 %v1312, %v1359
        %v1377 = vmul.f32 %v1313, %v1359
        %v1378 = vmul.f32 %v1314, %v1359
        %v1379 = vmul.f32 %v1315, %v1359
        %v1380 = vmul.f32 %v1316, %v1359
        %v1381 = vmul.f32 %v1317, %v1359
        %v1382 = vmul.f32 %v1318, %v1359
        %v1383 = vmul.f32 %v1319, %v1359
        %v1384 = vmul.f32 %v1320, %v1359
        %v1385 = vmul.f32 %v1321, %v1359
        %v1386 = vmul.f32 %v1322, %v1359
        %v1387 = vmul.f32 %v1323, %v1359
        %v1388 = vmul.f32 %v1324, %v1359
        %v1389 = vmul.f32 %v1325, %v1359
        %v1390 = vadd.f32 %v1326, %v1360
        %v1391 = vadd.f32 %v1327, %v1361
        %v1392 = vadd.f32 %v1328, %v1362
        %v1393 = vadd.f32 %v1329, %v1363
        %v1394 = vadd.f32 %v1330, %v1364
        %v1395 = vadd.f32 %v1331, %v1365
        %v1396 = vadd.f32 %v1332, %v1366
        %v1397 = vadd.f32 %v1333, %v1367
        %v1398 = vadd.f32 %v1334, %v1368
        %v1399 = vadd.f32 %v1335, %v1369
        %v1400 = vadd.f32 %v1336, %v1370
        %v1401 = vadd.f32 %v1337, %v1371
        %v1402 = vadd.f32 %v1338, %v1372
        %v1403 = vadd.f32 %v1339, %v1373
        %v1404 = vadd.f32 %v1340, %v1374
        %v1405 = vadd.f32 %v1341, %v1375
        %v1406 = vadd.f32 %v1342, %v1376
        %v1407 = vadd.f32 %v1343, %v1377
        %v1408 = vadd.f32 %v1344, %v1378
        %v1409 = vadd.f32 %v1345, %v1379
        %v1410 = vadd.f32 %v1346, %v1380
        %v1411 = vadd.f32 %v1347, %v1381
        %v1412 = vadd.f32 %v1348, %v1382
        %v1413 = vadd.f32 %v1349, %v1383
        %v1414 = vadd.f32 %v1350, %v1384
        %v1415 = vadd.f32 %v1351, %v1385
        %v1416 = vadd.f32 %v1352, %v1386
        %v1417 = vadd.f32 %v1353, %v1387
        %v1418 = vadd.f32 %v1354, %v1388
        %v1419 = vadd.f32 %v1355, %v1389
        %1420 = vst [vmem:[#allocation2] sm:$0xff] %v1390
        %1421 = vst [vmem:[#allocation2 + $0x8] sm:$0xff] %v1391
        %1422 = vst [vmem:[#allocation2 + $0x10] sm:$0xff] %v1392
        %1423 = vst [vmem:[#allocation2 + $0x18] sm:$0xff] %v1393
        %1424 = vst [vmem:[#allocation2 + $0x20] sm:$0xff] %v1394
        %1425 = vst [vmem:[#allocation2 + $0x28] sm:$0xff] %v1395
        %1426 = vst [vmem:[#allocation2 + $0x30] sm:$0xff] %v1396
        %1427 = vst [vmem:[#allocation2 + $0x38] sm:$0xff] %v1397
        %1428 = vst [vmem:[#allocation2 + $0x40] sm:$0xff] %v1398
        %1429 = vst [vmem:[#allocation2 + $0x48] sm:$0xff] %v1399
        %1430 = vst [vmem:[#allocation2 + $0x50] sm:$0xff] %v1400
        %1431 = vst [vmem:[#allocation2 + $0x58] sm:$0xff] %v1401
        %1432 = vst [vmem:[#allocation2 + $0x60] sm:$0xff] %v1402
        %1433 = vst [vmem:[#allocation2 + $0x68] sm:$0xff] %v1403
        %1434 = vst [vmem:[#allocation2 + $0x70] sm:$0xff] %v1404
        %1435 = vst [vmem:[#allocation2 + $0x78] sm:$0xff] %v1405
        %1436 = vst [vmem:[#allocation2 + $0x80] sm:$0xff] %v1406
        %1437 = vst [vmem:[#allocation2 + $0x88] sm:$0xff] %v1407
        %1438 = vst [vmem:[#allocation2 + $0x90] sm:$0xff] %v1408
        %1439 = vst [vmem:[#allocation2 + $0x98] sm:$0xff] %v1409
        %1440 = vst [vmem:[#allocation2 + $0xa0] sm:$0xff] %v1410
        %1441 = vst [vmem:[#allocation2 + $0xa8] sm:$0xff] %v1411
        %1442 = vst [vmem:[#allocation2 + $0xb0] sm:$0xff] %v1412
        %1443 = vst [vmem:[#allocation2 + $0xb8] sm:$0xff] %v1413
        %1444 = vst [vmem:[#allocation2 + $0xc0] sm:$0xff] %v1414
        %1445 = vst [vmem:[#allocation2 + $0xc8] sm:$0xff] %v1415
        %1446 = vst [vmem:[#allocation2 + $0xd0] sm:$0xff] %v1416
        %1447 = vst [vmem:[#allocation2 + $0xd8] sm:$0xff] %v1417
        %1448 = vst [vmem:[#allocation2 + $0xe0] sm:$0xff] %v1418
        %1449 = vst [vmem:[#allocation2 + $0xe8] sm:$0xff] %v1419
        %v1450 = vld [vmem:[%s1141 + $0x1] sm:$0xff]
        %v1451 = vld [vmem:[%s1141 + $0x9] sm:$0x7f]
        %v1452 = vld [vmem:[%s1141 + $0x11] sm:$0xff]
        %v1453 = vld [vmem:[%s1141 + $0x19] sm:$0x7f]
        %v1454 = vld [vmem:[%s1141 + $0x21] sm:$0xff]
        %v1455 = vld [vmem:[%s1141 + $0x29] sm:$0x7f]
        %v1456 = vld [vmem:[%s1141 + $0x31] sm:$0xff]
        %v1457 = vld [vmem:[%s1141 + $0x39] sm:$0x7f]
        %v1458 = vld [vmem:[%s1141 + $0x41] sm:$0xff]
        %v1459 = vld [vmem:[%s1141 + $0x49] sm:$0x7f]
        %v1460 = vld [vmem:[%s1141 + $0x51] sm:$0xff]
        %v1461 = vld [vmem:[%s1141 + $0x59] sm:$0x7f]
        %v1462 = vld [vmem:[%s1141 + $0x61] sm:$0xff]
        %v1463 = vld [vmem:[%s1141 + $0x69] sm:$0x7f]
        %v1464 = vld [vmem:[%s1141 + $0x71] sm:$0xff]
        %v1465 = vld [vmem:[%s1141 + $0x79] sm:$0x7f]
        %v1466 = vld [vmem:[%s1141 + $0x81] sm:$0xff]
        %v1467 = vld [vmem:[%s1141 + $0x89] sm:$0x7f]
        %v1468 = vld [vmem:[%s1141 + $0x91] sm:$0xff]
        %v1469 = vld [vmem:[%s1141 + $0x99] sm:$0x7f]
        %v1470 = vld [vmem:[%s1141 + $0xa1] sm:$0xff]
        %v1471 = vld [vmem:[%s1141 + $0xa9] sm:$0x7f]
        %v1472 = vld [vmem:[%s1141 + $0xb1] sm:$0xff]
        %v1473 = vld [vmem:[%s1141 + $0xb9] sm:$0x7f]
        %v1474 = vld [vmem:[%s1141 + $0xc1] sm:$0xff]
        %v1475 = vld [vmem:[%s1141 + $0xc9] sm:$0x7f]
        %v1476 = vld [vmem:[%s1141 + $0xd1] sm:$0xff]
        %v1477 = vld [vmem:[%s1141 + $0xd9] sm:$0x7f]
        %v1478 = vld [vmem:[%s1141 + $0xe1] sm:$0xff]
        %v1479 = vld [vmem:[%s1141 + $0xe9] sm:$0x7f]
        %v1480 = vld [vmem:[#allocation2] sm:$0xff]
        %v1481 = vld [vmem:[#allocation2 + $0x8] sm:$0x7f]
        %v1482 = vld [vmem:[#allocation2 + $0x10] sm:$0xff]
        %v1483 = vld [vmem:[#allocation2 + $0x18] sm:$0x7f]
        %v1484 = vld [vmem:[#allocation2 + $0x20] sm:$0xff]
        %v1485 = vld [vmem:[#allocation2 + $0x28] sm:$0x7f]
        %v1486 = vld [vmem:[#allocation2 + $0x30] sm:$0xff]
        %v1487 = vld [vmem:[#allocation2 + $0x38] sm:$0x7f]
        %v1488 = vld [vmem:[#allocation2 + $0x40] sm:$0xff]
        %v1489 = vld [vmem:[#allocation2 + $0x48] sm:$0x7f]
        %v1490 = vld [vmem:[#allocation2 + $0x50] sm:$0xff]
        %v1491 = vld [vmem:[#allocation2 + $0x58] sm:$0x7f]
        %v1492 = vld [vmem:[#allocation2 + $0x60] sm:$0xff]
        %v1493 = vld [vmem:[#allocation2 + $0x68] sm:$0x7f]
        %v1494 = vld [vmem:[#allocation2 + $0x70] sm:$0xff]
        %v1495 = vld [vmem:[#allocation2 + $0x78] sm:$0x7f]
        %v1496 = vld [vmem:[#allocation2 + $0x80] sm:$0xff]
        %v1497 = vld [vmem:[#allocation2 + $0x88] sm:$0x7f]
        %v1498 = vld [vmem:[#allocation2 + $0x90] sm:$0xff]
        %v1499 = vld [vmem:[#allocation2 + $0x98] sm:$0x7f]
        %v1500 = vld [vmem:[#allocation2 + $0xa0] sm:$0xff]
        %v1501 = vld [vmem:[#allocation2 + $0xa8] sm:$0x7f]
        %v1502 = vld [vmem:[#allocation2 + $0xb0] sm:$0xff]
        %v1503 = vld [vmem:[#allocation2 + $0xb8] sm:$0x7f]
        %v1504 = vld [vmem:[#allocation2 + $0xc0] sm:$0xff]
        %v1505 = vld [vmem:[#allocation2 + $0xc8] sm:$0x7f]
        %v1506 = vld [vmem:[#allocation2 + $0xd0] sm:$0xff]
        %v1507 = vld [vmem:[#allocation2 + $0xd8] sm:$0x7f]
        %v1508 = vld [vmem:[#allocation2 + $0xe0] sm:$0xff]
        %v1509 = vld [vmem:[#allocation2 + $0xe8] sm:$0x7f]
        %v1510 = vlaneseq
        %v1511 = vshrl.u32 %v1510, 7
        %v1512 = vsub.s32 0, %v1511
        %v1513 = vrot.slane %v248, %v1512
        %v1514 = vmul.f32 %v1450, %v1513
        %v1515 = vmul.f32 %v1451, %v1513
        %v1516 = vmul.f32 %v1452, %v1513
        %v1517 = vmul.f32 %v1453, %v1513
        %v1518 = vmul.f32 %v1454, %v1513
        %v1519 = vmul.f32 %v1455, %v1513
        %v1520 = vmul.f32 %v1456, %v1513
        %v1521 = vmul.f32 %v1457, %v1513
        %v1522 = vmul.f32 %v1458, %v1513
        %v1523 = vmul.f32 %v1459, %v1513
        %v1524 = vmul.f32 %v1460, %v1513
        %v1525 = vmul.f32 %v1461, %v1513
        %v1526 = vmul.f32 %v1462, %v1513
        %v1527 = vmul.f32 %v1463, %v1513
        %v1528 = vmul.f32 %v1464, %v1513
        %v1529 = vmul.f32 %v1465, %v1513
        %v1530 = vmul.f32 %v1466, %v1513
        %v1531 = vmul.f32 %v1467, %v1513
        %v1532 = vmul.f32 %v1468, %v1513
        %v1533 = vmul.f32 %v1469, %v1513
        %v1534 = vmul.f32 %v1470, %v1513
        %v1535 = vmul.f32 %v1471, %v1513
        %v1536 = vmul.f32 %v1472, %v1513
        %v1537 = vmul.f32 %v1473, %v1513
        %v1538 = vmul.f32 %v1474, %v1513
        %v1539 = vmul.f32 %v1475, %v1513
        %v1540 = vmul.f32 %v1476, %v1513
        %v1541 = vmul.f32 %v1477, %v1513
        %v1542 = vmul.f32 %v1478, %v1513
        %v1543 = vmul.f32 %v1479, %v1513
        %v1544 = vadd.f32 %v1480, %v1514
        %v1545 = vadd.f32 %v1481, %v1515
        %v1546 = vadd.f32 %v1482, %v1516
        %v1547 = vadd.f32 %v1483, %v1517
        %v1548 = vadd.f32 %v1484, %v1518
        %v1549 = vadd.f32 %v1485, %v1519
        %v1550 = vadd.f32 %v1486, %v1520
        %v1551 = vadd.f32 %v1487, %v1521
        %v1552 = vadd.f32 %v1488, %v1522
        %v1553 = vadd.f32 %v1489, %v1523
        %v1554 = vadd.f32 %v1490, %v1524
        %v1555 = vadd.f32 %v1491, %v1525
        %v1556 = vadd.f32 %v1492, %v1526
        %v1557 = vadd.f32 %v1493, %v1527
        %v1558 = vadd.f32 %v1494, %v1528
        %v1559 = vadd.f32 %v1495, %v1529
        %v1560 = vadd.f32 %v1496, %v1530
        %v1561 = vadd.f32 %v1497, %v1531
        %v1562 = vadd.f32 %v1498, %v1532
        %v1563 = vadd.f32 %v1499, %v1533
        %v1564 = vadd.f32 %v1500, %v1534
        %v1565 = vadd.f32 %v1501, %v1535
        %v1566 = vadd.f32 %v1502, %v1536
        %v1567 = vadd.f32 %v1503, %v1537
        %v1568 = vadd.f32 %v1504, %v1538
        %v1569 = vadd.f32 %v1505, %v1539
        %v1570 = vadd.f32 %v1506, %v1540
        %v1571 = vadd.f32 %v1507, %v1541
        %v1572 = vadd.f32 %v1508, %v1542
        %v1573 = vadd.f32 %v1509, %v1543
        %1574 = vst [vmem:[#allocation2] sm:$0xff] %v1544
        %1575 = vst [vmem:[#allocation2 + $0x8] sm:$0x7f] %v1545
        %1576 = vst [vmem:[#allocation2 + $0x10] sm:$0xff] %v1546
        %1577 = vst [vmem:[#allocation2 + $0x18] sm:$0x7f] %v1547
        %1578 = vst [vmem:[#allocation2 + $0x20] sm:$0xff] %v1548
        %1579 = vst [vmem:[#allocation2 + $0x28] sm:$0x7f] %v1549
        %1580 = vst [vmem:[#allocation2 + $0x30] sm:$0xff] %v1550
        %1581 = vst [vmem:[#allocation2 + $0x38] sm:$0x7f] %v1551
        %1582 = vst [vmem:[#allocation2 + $0x40] sm:$0xff] %v1552
        %1583 = vst [vmem:[#allocation2 + $0x48] sm:$0x7f] %v1553
        %1584 = vst [vmem:[#allocation2 + $0x50] sm:$0xff] %v1554
        %1585 = vst [vmem:[#allocation2 + $0x58] sm:$0x7f] %v1555
        %1586 = vst [vmem:[#allocation2 + $0x60] sm:$0xff] %v1556
        %1587 = vst [vmem:[#allocation2 + $0x68] sm:$0x7f] %v1557
        %1588 = vst [vmem:[#allocation2 + $0x70] sm:$0xff] %v1558
        %1589 = vst [vmem:[#allocation2 + $0x78] sm:$0x7f] %v1559
        %1590 = vst [vmem:[#allocation2 + $0x80] sm:$0xff] %v1560
        %1591 = vst [vmem:[#allocation2 + $0x88] sm:$0x7f] %v1561
        %1592 = vst [vmem:[#allocation2 + $0x90] sm:$0xff] %v1562
        %1593 = vst [vmem:[#allocation2 + $0x98] sm:$0x7f] %v1563
        %1594 = vst [vmem:[#allocation2 + $0xa0] sm:$0xff] %v1564
        %1595 = vst [vmem:[#allocation2 + $0xa8] sm:$0x7f] %v1565
        %1596 = vst [vmem:[#allocation2 + $0xb0] sm:$0xff] %v1566
        %1597 = vst [vmem:[#allocation2 + $0xb8] sm:$0x7f] %v1567
        %1598 = vst [vmem:[#allocation2 + $0xc0] sm:$0xff] %v1568
        %1599 = vst [vmem:[#allocation2 + $0xc8] sm:$0x7f] %v1569
        %1600 = vst [vmem:[#allocation2 + $0xd0] sm:$0xff] %v1570
        %1601 = vst [vmem:[#allocation2 + $0xd8] sm:$0x7f] %v1571
        %1602 = vst [vmem:[#allocation2 + $0xe0] sm:$0xff] %v1572
        %1603 = vst [vmem:[#allocation2 + $0xe8] sm:$0x7f] %v1573
        %v1604 = vld [vmem:[#allocation2] sm:$0xff]
        %v1605 = vld [vmem:[#allocation2 + $0x8] sm:$0xff]
        %v1606 = vld [vmem:[#allocation2 + $0x10] sm:$0xff]
        %v1607 = vld [vmem:[#allocation2 + $0x18] sm:$0xff]
        %v1608 = vld [vmem:[#allocation2 + $0x20] sm:$0xff]
        %v1609 = vld [vmem:[#allocation2 + $0x28] sm:$0xff]
        %v1610 = vld [vmem:[#allocation2 + $0x30] sm:$0xff]
        %v1611 = vld [vmem:[#allocation2 + $0x38] sm:$0xff]
        %v1612 = vld [vmem:[#allocation2 + $0x40] sm:$0xff]
        %v1613 = vld [vmem:[#allocation2 + $0x48] sm:$0xff]
        %v1614 = vld [vmem:[#allocation2 + $0x50] sm:$0xff]
        %v1615 = vld [vmem:[#allocation2 + $0x58] sm:$0xff]
        %v1616 = vld [vmem:[#allocation2 + $0x60] sm:$0xff]
        %v1617 = vld [vmem:[#allocation2 + $0x68] sm:$0xff]
        %v1618 = vld [vmem:[#allocation2 + $0x70] sm:$0xff]
        %v1619 = vld [vmem:[#allocation2 + $0x78] sm:$0xff]
        %v1620 = vld [vmem:[#allocation2 + $0x80] sm:$0xff]
        %v1621 = vld [vmem:[#allocation2 + $0x88] sm:$0xff]
        %v1622 = vld [vmem:[#allocation2 + $0x90] sm:$0xff]
        %v1623 = vld [vmem:[#allocation2 + $0x98] sm:$0xff]
        %v1624 = vld [vmem:[#allocation2 + $0xa0] sm:$0xff]
        %v1625 = vld [vmem:[#allocation2 + $0xa8] sm:$0xff]
        %v1626 = vld [vmem:[#allocation2 + $0xb0] sm:$0xff]
        %v1627 = vld [vmem:[#allocation2 + $0xb8] sm:$0xff]
        %v1628 = vld [vmem:[#allocation2 + $0xc0] sm:$0xff]
        %v1629 = vld [vmem:[#allocation2 + $0xc8] sm:$0xff]
        %v1630 = vld [vmem:[#allocation2 + $0xd0] sm:$0xff]
        %v1631 = vld [vmem:[#allocation2 + $0xd8] sm:$0xff]
        %v1632 = vld [vmem:[#allocation2 + $0xe0] sm:$0xff]
        %v1633 = vld [vmem:[#allocation2 + $0xe8] sm:$0xff]
        %v1634 = vld [vmem:[#allocation2 + $0xf0] sm:$0xff]
        %v1635 = vld [vmem:[#allocation2 + $0xf8] sm:$0xff]
        %v1637 = vlaneseq
        %v1638 = vshrl.u32 %v1637, 7
        %v1639 = vsub.s32 0, %v1638
        %v1640 = vrot.slane %v249, %v1639
        %v1642 = vadd.f32 %v1604, %v1640
        %v1643 = vadd.f32 %v1605, %v1640
        %v1644 = vadd.f32 %v1606, %v1640
        %v1645 = vadd.f32 %v1607, %v1640
        %v1646 = vadd.f32 %v1608, %v1640
        %v1647 = vadd.f32 %v1609, %v1640
        %v1648 = vadd.f32 %v1610, %v1640
        %v1649 = vadd.f32 %v1611, %v1640
        %v1650 = vadd.f32 %v1612, %v1640
        %v1651 = vadd.f32 %v1613, %v1640
        %v1652 = vadd.f32 %v1614, %v1640
        %v1653 = vadd.f32 %v1615, %v1640
        %v1654 = vadd.f32 %v1616, %v1640
        %v1655 = vadd.f32 %v1617, %v1640
        %v1656 = vadd.f32 %v1618, %v1640
        %v1657 = vadd.f32 %v1619, %v1640
        %v1658 = vadd.f32 %v1620, %v1640
        %v1659 = vadd.f32 %v1621, %v1640
        %v1660 = vadd.f32 %v1622, %v1640
        %v1661 = vadd.f32 %v1623, %v1640
        %v1662 = vadd.f32 %v1624, %v1640
        %v1663 = vadd.f32 %v1625, %v1640
        %v1664 = vadd.f32 %v1626, %v1640
        %v1665 = vadd.f32 %v1627, %v1640
        %v1666 = vadd.f32 %v1628, %v1640
        %v1667 = vadd.f32 %v1629, %v1640
        %v1668 = vadd.f32 %v1630, %v1640
        %v1669 = vadd.f32 %v1631, %v1640
        %v1670 = vadd.f32 %v1632, %v1640
        %v1671 = vadd.f32 %v1633, %v1640
        %v1672 = vadd.f32 %v1634, %v1640
        %v1673 = vadd.f32 %v1635, %v1640
        %1674 = vst [vmem:[%s246] sm:$0xff] %v1642
        %1675 = vst [vmem:[%s246 + $0x8] sm:$0xff] %v1643
        %1676 = vst [vmem:[%s246 + $0x10] sm:$0xff] %v1644
        %1677 = vst [vmem:[%s246 + $0x18] sm:$0xff] %v1645
        %1678 = vst [vmem:[%s246 + $0x20] sm:$0xff] %v1646
        %1679 = vst [vmem:[%s246 + $0x28] sm:$0xff] %v1647
        %1680 = vst [vmem:[%s246 + $0x30] sm:$0xff] %v1648
        %1681 = vst [vmem:[%s246 + $0x38] sm:$0xff] %v1649
        %1682 = vst [vmem:[%s246 + $0x40] sm:$0xff] %v1650
        %1683 = vst [vmem:[%s246 + $0x48] sm:$0xff] %v1651
        %1684 = vst [vmem:[%s246 + $0x50] sm:$0xff] %v1652
        %1685 = vst [vmem:[%s246 + $0x58] sm:$0xff] %v1653
        %1686 = vst [vmem:[%s246 + $0x60] sm:$0xff] %v1654
        %1687 = vst [vmem:[%s246 + $0x68] sm:$0xff] %v1655
        %1688 = vst [vmem:[%s246 + $0x70] sm:$0xff] %v1656
        %1689 = vst [vmem:[%s246 + $0x78] sm:$0xff] %v1657
        %1690 = vst [vmem:[%s246 + $0x80] sm:$0xff] %v1658
        %1691 = vst [vmem:[%s246 + $0x88] sm:$0xff] %v1659
        %1692 = vst [vmem:[%s246 + $0x90] sm:$0xff] %v1660
        %1693 = vst [vmem:[%s246 + $0x98] sm:$0xff] %v1661
        %1694 = vst [vmem:[%s246 + $0xa0] sm:$0xff] %v1662
        %1695 = vst [vmem:[%s246 + $0xa8] sm:$0xff] %v1663
        %1696 = vst [vmem:[%s246 + $0xb0] sm:$0xff] %v1664
        %1697 = vst [vmem:[%s246 + $0xb8] sm:$0xff] %v1665
        %1698 = vst [vmem:[%s246 + $0xc0] sm:$0xff] %v1666
        %1699 = vst [vmem:[%s246 + $0xc8] sm:$0xff] %v1667
        %1700 = vst [vmem:[%s246 + $0xd0] sm:$0xff] %v1668
        %1701 = vst [vmem:[%s246 + $0xd8] sm:$0xff] %v1669
        %1702 = vst [vmem:[%s246 + $0xe0] sm:$0xff] %v1670
        %1703 = vst [vmem:[%s246 + $0xe8] sm:$0xff] %v1671
        %1704 = vst [vmem:[%s246 + $0xf0] sm:$0xff] %v1672
        %1705 = vst [vmem:[%s246 + $0xf8] sm:$0xff] %v1673
        %s1706 = sand.u32 %s123, 1
        %s1707 = scalar_lea.sflag [#allocation5], %s1706
        %s1708 = sand.u32 %s123, 1
        %s1709 = smul.addr %s1708, 256
        %s1710 = scalar_lea.vmem [#allocation9], %s1709
        // Predicated region
        $region45: #{tpu_custom_call.1} parent=31 // pred_check
          %p1711 = pneg %p133
        $region46: #{tpu_custom_call.1} parent=31 // pred_check_branch
          %1713 = sbr.rel (%p1711) target = $region48
        $region47: #{tpu_custom_call.1} parent=31 // pred_region
          %s1715 = ssub.s32 4096, 4096
          %1716 = vsyncadd %s1707, %s1715
          %s1717 = smul.addr %s25, 32
          %s1718 = sadd.s32 %s26, %s1717
          %s1719 = smul.addr %s1718, 128
          %s1720 = scalar_lea.hbm %s3, %s1719
          %s1721 = sshll.u32 %s1710, 4
          %s1722 = int_to_ptr.vmem [resolvable:$true] %s1721
          %1727 = dma.vmem_to_hbm [thread:$0]  %s1722, 4096, %s1720, %s1707, 128, 128, 8
        $region48: #{tpu_custom_call.1} parent=31 // pred_fallthru
          _
      $region32: #{tpu_custom_call.1} parent=5 // pred_fallthru
        _
      %p1728 = scmp.le.s32.totalorder 2, %s16
      // Predicated region
      $region49: #{tpu_custom_call.1} parent=5 // pred_check
        %p1729 = pneg %p1728
      $region50: #{tpu_custom_call.1} parent=5 // pred_check_branch
        %1731 = sbr.rel (%p1729) target = $region52
      $region51: #{tpu_custom_call.1} parent=5 // pred_region
        %s1732 = ssub.s32 %s16, 2
        // Predicated region
        $region53: #{tpu_custom_call.1} parent=51 // pred_check
          %p1733 = pneg %p139
        $region54: #{tpu_custom_call.1} parent=51 // pred_check_branch
          %1735 = sbr.rel (%p1733) target = $region56
        $region55: #{tpu_custom_call.1} parent=51 // pred_region
          %s1736 = sand.u32 %s124, 1
          %s1737 = scalar_lea.sflag [#allocation5], %s1736
          %s1738 = sand.u32 %s124, 1
          %s1739 = smul.addr %s1738, 256
          %s1740 = scalar_lea.vmem [#allocation9], %s1739
          %1741 = dma.done %s1737, 4096
        $region56: #{tpu_custom_call.1} parent=51 // pred_fallthru
          _
      $region52: #{tpu_custom_call.1} parent=5 // pred_fallthru
        _
    $region6: #{tpu_custom_call.1} parent=1 // loop_footer
      %s20 = sadd.s32 1, %s16
    $region7: #{tpu_custom_call.1} parent=1 // loop_footer_branch
      %15 = sbr.rel target = $region3
    $region8: #{tpu_custom_call.1} parent=1 // loop_exit
      _
    %1742 = vsyncpa [#allocation4], 1
    %s1743 = scalar_lea.sflag [#allocation4], 1
    %1744 = vsyncpa %s1743, 1
    %1745 = vsyncpa [#allocation7], 1
    %1746 = vsyncpa [#allocation5], 1
    %s1747 = scalar_lea.sflag [#allocation5], 1
    %1748 = vsyncpa %s1747, 1

</llo_original>
